<compile_context>
chip_gen: v7x
topology: tpu7x:2x2x1
jax: 0.10.0
libtpu: 0.0.40
codegen_flags: <defaults>
</compile_context>

<pallas_src>
import jax
import jax.numpy as jnp
from jax.experimental import pallas as pl
from jax.experimental.pallas import tpu as pltpu

LATENT_DIM = 20
HIDDEN_DIM = 400
DATA_SIZE = (1, 28, 28)
DATA_DIM = 1 * 28 * 28                      # 784
DATA_DIM_PAD = 896                          # next multiple of 128 (lane-dense)
ETA = 1e-6                                  # Constants.eta in MMVAE
MAX_TILE_B = 512                            # rows per grid step


def _round_up(x, m):
    return (x + m - 1) // m * m


def dec_kernel(z_ref, w1_ref, b1_ref, w2_ref, b2_ref, out_ref):
    # hidden layer: Linear + ReLU  (MXU matmul, f32 accumulate)
    h = jnp.dot(z_ref[...], w1_ref[...], preferred_element_type=jnp.float32)
    h = jnp.maximum(h + b1_ref[...], 0.0)
    # output layer: Linear (padded to 896 lanes -> unmasked full-vreg stores)
    p = jnp.dot(h, w2_ref[...], preferred_element_type=jnp.float32) + b2_ref[...]
    # sigmoid + clamp(eta, 1 - eta)
    out_ref[...] = jnp.clip(jax.nn.sigmoid(p), ETA, 1.0 - ETA)


def dec_forward(z, params):
    """z: (..., latent_dim) f32.  Returns (d, 0.75) matching the torch module."""
    w1, b1, w2, b2 = params
    lead = z.shape[:-1]
    z2d = z.reshape(-1, z.shape[-1]).astype(jnp.float32)
    B = z2d.shape[0]

    # Pad fc3 weights/bias to a lane-dense 896-column output.
    w2p = jnp.pad(w2.astype(jnp.float32), ((0, 0), (0, DATA_DIM_PAD - DATA_DIM)))
    b2p = jnp.pad(b2.astype(jnp.float32), ((0, 0), (0, DATA_DIM_PAD - DATA_DIM)))
    w1f = w1.astype(jnp.float32)
    b1f = b1.astype(jnp.float32)

    # Tile the batch: multiple of 8 sublanes, capped at MAX_TILE_B.
    tile_b = min(MAX_TILE_B, _round_up(max(B, 1), 8))
    b_pad = _round_up(max(B, 1), tile_b)
    if b_pad != B:
        z2d = jnp.pad(z2d, ((0, b_pad - B), (0, 0)))
    grid = (b_pad // tile_b,)

    cost = pl.CostEstimate(
        flops=2 * b_pad * (LATENT_DIM * HIDDEN_DIM + HIDDEN_DIM * DATA_DIM_PAD),
        transcendentals=b_pad * DATA_DIM_PAD,
        bytes_accessed=(z2d.size + w1f.size + b1f.size + w2p.size + b2p.size
                        + b_pad * DATA_DIM_PAD) * 4,
    )

    out = pl.pallas_call(
        dec_kernel,
        out_shape=jax.ShapeDtypeStruct((b_pad, DATA_DIM_PAD), jnp.float32),
        grid=grid,
        in_specs=[
            pl.BlockSpec((tile_b, LATENT_DIM), lambda i: (i, 0)),      # z tile
            pl.BlockSpec((LATENT_DIM, HIDDEN_DIM), lambda i: (0, 0)),  # w1 (resident)
            pl.BlockSpec((1, HIDDEN_DIM), lambda i: (0, 0)),           # b1 (resident)
            pl.BlockSpec((HIDDEN_DIM, DATA_DIM_PAD), lambda i: (0, 0)),# w2 (resident)
            pl.BlockSpec((1, DATA_DIM_PAD), lambda i: (0, 0)),         # b2 (resident)
        ],
        out_specs=pl.BlockSpec((tile_b, DATA_DIM_PAD), lambda i: (i, 0)),
        compiler_params=pltpu.CompilerParams(
            dimension_semantics=("parallel",),      # megacore sharding on v7x
            vmem_limit_bytes=64 * 1024 * 1024,
        ),
        cost_estimate=cost,
    )(z2d, w1f, b1f, w2p, b2p)

    d = out[:B, :DATA_DIM].reshape(*lead, *DATA_SIZE)
    return d, jnp.float32(0.75)


def init_params(key):
    """Deterministic init mimicking torch.nn.Linear defaults: U(-1/sqrt(fan_in), +)."""
    k1, k2, k3, k4 = jax.random.split(key, 4)
    lim1 = 1.0 / jnp.sqrt(LATENT_DIM)
    lim2 = 1.0 / jnp.sqrt(HIDDEN_DIM)
    w1 = jax.random.uniform(k1, (LATENT_DIM, HIDDEN_DIM), jnp.float32, -lim1, lim1)
    b1 = jax.random.uniform(k2, (1, HIDDEN_DIM), jnp.float32, -lim1, lim1)
    w2 = jax.random.uniform(k3, (HIDDEN_DIM, DATA_DIM), jnp.float32, -lim2, lim2)
    b2 = jax.random.uniform(k4, (1, DATA_DIM), jnp.float32, -lim2, lim2)
    return w1, b1, w2, b2


if __name__ == "__main__":
    key = jax.random.PRNGKey(0)
    kz, kp = jax.random.split(key)
    params = init_params(kp)

    B = 8
    z = jax.random.normal(kz, (B, LATENT_DIM), jnp.float32)

    d, scale = dec_forward(z, params)
    d = jax.block_until_ready(d)

    # sanity checks vs. pure-JAX reference
    w1, b1, w2, b2 = params
    h_ref = jnp.maximum(z @ w1 + b1, 0.0)
    p_ref = h_ref @ w2 + b2
    d_ref = jnp.clip(jax.nn.sigmoid(p_ref), ETA, 1.0 - ETA).reshape(B, *DATA_SIZE)

    assert d.shape == (B, 1, 28, 28), d.shape
    assert jnp.allclose(d, d_ref, atol=1e-5, rtol=1e-5)
    assert float(scale) == 0.75

    # a second, non-tile-aligned larger batch to exercise the grid + padding path
    B2 = 1000
    z2 = jax.random.normal(jax.random.PRNGKey(3), (4, B2 // 4, LATENT_DIM), jnp.float32)
    d2, _ = dec_forward(z2, params)
    d2 = jax.block_until_ready(d2)
    z2f = z2.reshape(-1, LATENT_DIM)
    d2_ref = jnp.clip(
        jax.nn.sigmoid(jnp.maximum(z2f @ w1 + b1, 0.0) @ w2 + b2), ETA, 1.0 - ETA
    ).reshape(4, B2 // 4, *DATA_SIZE)
    assert d2.shape == (4, B2 // 4, 1, 28, 28), d2.shape
    assert jnp.allclose(d2, d2_ref, atol=1e-5, rtol=1e-5)

    print("KERNEL_OK")
</pallas_src>

<mosaic_0001>
module attributes {stable_mosaic.version = 11 : i64} {
  func.func @dec_kernel(%arg0: i32, %arg1: memref<8x20xf32, #tpu.memory_space<vmem>>, %arg2: memref<20x400xf32, #tpu.memory_space<vmem>>, %arg3: memref<1x400xf32, #tpu.memory_space<vmem>>, %arg4: memref<400x896xf32, #tpu.memory_space<vmem>>, %arg5: memref<1x896xf32, #tpu.memory_space<vmem>>, %arg6: memref<8x896xf32, #tpu.memory_space<vmem>>) attributes {dimension_semantics = [#tpu.dimension_semantics<parallel>], iteration_bounds = array<i64: 1>, scalar_prefetch = 0 : i64, scratch_operands = 0 : i64, tpu.core_type = #tpu.core_type<tc>, window_params = [{transform_indices = @transform_0, window_bounds = array<i64: 8, 20>}, {pipeline_mode = #tpu.pipeline_mode<synchronous>, transform_indices = @transform_1, window_bounds = array<i64: 20, 400>}, {pipeline_mode = #tpu.pipeline_mode<synchronous>, transform_indices = @transform_2, window_bounds = array<i64: 1, 400>}, {pipeline_mode = #tpu.pipeline_mode<synchronous>, transform_indices = @transform_3, window_bounds = array<i64: 400, 896>}, {pipeline_mode = #tpu.pipeline_mode<synchronous>, transform_indices = @transform_4, window_bounds = array<i64: 1, 896>}, {transform_indices = @transform_5, window_bounds = array<i64: 8, 896>}]} {
    %c0 = arith.constant 0 : index
    %c0_0 = arith.constant 0 : index
    %0 = vector.load %arg1[%c0, %c0_0] : memref<8x20xf32, #tpu.memory_space<vmem>>, vector<8x20xf32>
    %c0_1 = arith.constant 0 : index
    %c0_2 = arith.constant 0 : index
    %1 = vector.load %arg2[%c0_1, %c0_2] : memref<20x400xf32, #tpu.memory_space<vmem>>, vector<20x400xf32>
    %cst = arith.constant dense<0.000000e+00> : vector<8x400xf32>
    %2 = tpu.matmul %0, %1, %cst {dimension_numbers = #tpu.dot_dimension_numbers<[1], [0], [0], [1], [0, 0, 1, 1], [], []>} : vector<8x20xf32>, vector<20x400xf32>, vector<8x400xf32> -> vector<8x400xf32>
    %c0_3 = arith.constant 0 : index
    %c0_4 = arith.constant 0 : index
    %3 = vector.load %arg3[%c0_3, %c0_4] : memref<1x400xf32, #tpu.memory_space<vmem>>, vector<1x400xf32>
    %4 = vector.broadcast %3 : vector<1x400xf32> to vector<8x400xf32>
    %5 = arith.addf %2, %4 : vector<8x400xf32>
    %cst_5 = arith.constant 0.000000e+00 : f32
    %6 = vector.broadcast %cst_5 : f32 to vector<8x400xf32>
    %7 = arith.maximumf %5, %6 : vector<8x400xf32>
    %c0_6 = arith.constant 0 : index
    %c0_7 = arith.constant 0 : index
    %8 = vector.load %arg4[%c0_6, %c0_7] : memref<400x896xf32, #tpu.memory_space<vmem>>, vector<400x896xf32>
    %cst_8 = arith.constant dense<0.000000e+00> : vector<8x896xf32>
    %9 = tpu.matmul %7, %8, %cst_8 {dimension_numbers = #tpu.dot_dimension_numbers<[1], [0], [0], [1], [0, 0, 1, 1], [], []>} : vector<8x400xf32>, vector<400x896xf32>, vector<8x896xf32> -> vector<8x896xf32>
    %c0_9 = arith.constant 0 : index
    %c0_10 = arith.constant 0 : index
    %10 = vector.load %arg5[%c0_9, %c0_10] : memref<1x896xf32, #tpu.memory_space<vmem>>, vector<1x896xf32>
    %11 = vector.broadcast %10 : vector<1x896xf32> to vector<8x896xf32>
    %12 = arith.addf %9, %11 : vector<8x896xf32>
    %13 = arith.negf %12 : vector<8x896xf32>
    %14 = math.exp %13 : vector<8x896xf32>
    %cst_11 = arith.constant 1.000000e+00 : f32
    %15 = vector.broadcast %cst_11 : f32 to vector<8x896xf32>
    %16 = arith.addf %15, %14 : vector<8x896xf32>
    %17 = arith.divf %15, %16 : vector<8x896xf32>
    %cst_12 = arith.constant 9.99999997E-7 : f32
    %cst_13 = arith.constant 0.999998986 : f32
    %18 = vector.broadcast %cst_12 : f32 to vector<8x896xf32>
    %19 = arith.maximumf %18, %17 : vector<8x896xf32>
    %20 = vector.broadcast %cst_13 : f32 to vector<8x896xf32>
    %21 = arith.minimumf %20, %19 : vector<8x896xf32>
    %c0_14 = arith.constant 0 : index
    %c0_15 = arith.constant 0 : index
    %22 = vector.load %arg6[%c0_14, %c0_15] : memref<8x896xf32, #tpu.memory_space<vmem>>, vector<8x896xf32>
    tpu.vector_store %arg6[%c0_14, %c0_15], %21 {strides = array<i32>} : memref<8x896xf32, #tpu.memory_space<vmem>>, vector<8x896xf32>,
    return
  }
  func.func @transform_0(%arg0: i32) -> (i32, i32) {
    %c0_i32 = arith.constant 0 : i32
    %c0_i32_0 = arith.constant 0 : i32
    return %arg0, %c0_i32 : i32, i32
  }
  func.func @transform_1(%arg0: i32) -> (i32, i32) {
    %c0_i32 = arith.constant 0 : i32
    %c0_i32_0 = arith.constant 0 : i32
    %c0_i32_1 = arith.constant 0 : i32
    return %c0_i32, %c0_i32_0 : i32, i32
  }
  func.func @transform_2(%arg0: i32) -> (i32, i32) {
    %c0_i32 = arith.constant 0 : i32
    %c0_i32_0 = arith.constant 0 : i32
    %c0_i32_1 = arith.constant 0 : i32
    return %c0_i32, %c0_i32_0 : i32, i32
  }
  func.func @transform_3(%arg0: i32) -> (i32, i32) {
    %c0_i32 = arith.constant 0 : i32
    %c0_i32_0 = arith.constant 0 : i32
    %c0_i32_1 = arith.constant 0 : i32
    return %c0_i32, %c0_i32_0 : i32, i32
  }
  func.func @transform_4(%arg0: i32) -> (i32, i32) {
    %c0_i32 = arith.constant 0 : i32
    %c0_i32_0 = arith.constant 0 : i32
    %c0_i32_1 = arith.constant 0 : i32
    return %c0_i32, %c0_i32_0 : i32, i32
  }
  func.func @transform_5(%arg0: i32) -> (i32, i32) {
    %c0_i32 = arith.constant 0 : i32
    %c0_i32_0 = arith.constant 0 : i32
    return %arg0, %c0_i32 : i32, i32
  }
}

</mosaic_0001>

<llo_original>
// kernel: tpu_custom_call.1
$region0: #{tpu_custom_call.1}
  #allocation0 [shape = 'u32[]', space=smem, size = 0x4, offset = 0x4, fixed_abs, tag = 'smem constant byte address 0x4 - core index']
  #allocation1 [shape = 'u32[144,128]{1,0:T(1,128)}', space=vmem, size = 0x12000, scoped, tag = 'internal scratch']
  %s0 = inlined_call_operand.hbm [shape: f32[8,20], index: 0, kind: input, shape index: {}]
  %s1 = inlined_call_operand.hbm [shape: f32[20,400], index: 1, kind: input, shape index: {}]
  %s2 = inlined_call_operand.hbm [shape: f32[1,400], index: 2, kind: input, shape index: {}]
  %s3 = inlined_call_operand.hbm [shape: f32[400,896], index: 3, kind: input, shape index: {}]
  %s4 = inlined_call_operand.hbm [shape: f32[1,896], index: 4, kind: input, shape index: {}]
  %s5 = inlined_call_operand.hbm [shape: f32[8,896], index: 5, kind: output, shape index: {}]
  %s6 = sld [smem:[#allocation0]]
  $region50: #{tpu_custom_call.1} parent=0
    _
  %s8 = ssub.s32 1, %s6
  %s9 = scalar_select 0, %s8, %s6
  $region1: #{tpu_custom_call.1} parent=0
    #allocation2 [shape = 'u8[4096]{0}', space=vmem, size = 0x1000, scoped, tag = 'input window, operand 0, single buffered']
    #allocation3 [shape = 's32[1]{0}', space=sflag, size = 0x4, scoped, tag = 'scoped memory for tpu_custom_call.1']
    #allocation4 [shape = 's32[1]{0}', space=sflag, size = 0x4, scoped, tag = 'scoped memory for tpu_custom_call.1']
    #allocation5 [shape = 'u8[49152]{0}', space=vmem, size = 0xc000, scoped, tag = 'input window, operand 1, single buffered']
    #allocation6 [shape = 's32[1]{0}', space=sflag, size = 0x4, scoped, tag = 'scoped memory for tpu_custom_call.1']
    #allocation7 [shape = 'u8[2048]{0}', space=vmem, size = 0x800, scoped, tag = 'input window, operand 2, single buffered']
    #allocation8 [shape = 'u8[1433600]{0}', space=vmem, size = 0x15e000, scoped, tag = 'input window, operand 3, single buffered']
    #allocation9 [shape = 's32[1]{0}', space=sflag, size = 0x4, scoped, tag = 'scoped memory for tpu_custom_call.1']
    #allocation10 [shape = 'u8[3584]{0}', space=vmem, size = 0x1000, scoped, tag = 'input window, operand 4, single buffered']
    #allocation11 [shape = 'u8[28672]{0}', space=vmem, size = 0x7000, scoped, tag = 'output window, operand 0, single buffered']
    %10 = vsyncpa [#allocation3], 0
    %11 = vsyncpa [#allocation6], 0
    %12 = vsyncpa [#allocation9], 0
    %13 = vsyncpa [#allocation4], 0
    // Predicated region
    $region2: #{tpu_custom_call.1} parent=1 // pred_check
      _
    $region3: #{tpu_custom_call.1} parent=1 // pred_check_branch
      %15 = sbr.rel (0) target = $region5
    $region4: #{tpu_custom_call.1} parent=1 // pred_region
      %s17 = ssub.s32 128, 128
      %18 = vsyncadd [#allocation3], %s17
      %s20 = sshll.u32 [#allocation2], 4
      %s21 = int_to_ptr.vmem [resolvable:$true] %s20
      %23 = dma.hbm_to_vmem [thread:$0]  %s0, 128, %s21, [#allocation3]
    $region5: #{tpu_custom_call.1} parent=1 // pred_fallthru
      _
    // Predicated region
    $region6: #{tpu_custom_call.1} parent=1 // pred_check
      _
    $region7: #{tpu_custom_call.1} parent=1 // pred_check_branch
      %25 = sbr.rel (0) target = $region9
    $region8: #{tpu_custom_call.1} parent=1 // pred_region
      %s27 = ssub.s32 1536, 1536
      %28 = vsyncadd [#allocation6], %s27
      %s29 = sshll.u32 [#allocation5], 4
      %s30 = int_to_ptr.vmem [resolvable:$true] %s29
      %35 = dma.hbm_to_vmem [thread:$0]  %s1, 1536, %s30, [#allocation6], 512, 512, 32
    $region9: #{tpu_custom_call.1} parent=1 // pred_fallthru
      _
    // Predicated region
    $region10: #{tpu_custom_call.1} parent=1 // pred_check
      _
    $region11: #{tpu_custom_call.1} parent=1 // pred_check_branch
      %37 = sbr.rel (0) target = $region13
    $region12: #{tpu_custom_call.1} parent=1 // pred_region
      %s39 = ssub.s32 64, 64
      %40 = vsyncadd [#allocation6], %s39
      %s42 = sshll.u32 [#allocation7], 4
      %s43 = int_to_ptr.vmem [resolvable:$true] %s42
      %45 = dma.hbm_to_vmem [thread:$0]  %s2, 64, %s43, [#allocation6]
    $region13: #{tpu_custom_call.1} parent=1 // pred_fallthru
      _
    // Predicated region
    $region14: #{tpu_custom_call.1} parent=1 // pred_check
      _
    $region15: #{tpu_custom_call.1} parent=1 // pred_check_branch
      %47 = sbr.rel (0) target = $region17
    $region16: #{tpu_custom_call.1} parent=1 // pred_region
      %s49 = ssub.s32 44800, 44800
      %50 = vsyncadd [#allocation9], %s49
      %s51 = sshll.u32 [#allocation8], 4
      %s52 = int_to_ptr.vmem [resolvable:$true] %s51
      %57 = dma.hbm_to_vmem [thread:$0]  %s3, 44800, %s52, [#allocation9], 896, 896, 56
    $region17: #{tpu_custom_call.1} parent=1 // pred_fallthru
      _
    // Predicated region
    $region18: #{tpu_custom_call.1} parent=1 // pred_check
      _
    $region19: #{tpu_custom_call.1} parent=1 // pred_check_branch
      %59 = sbr.rel (0) target = $region21
    $region20: #{tpu_custom_call.1} parent=1 // pred_region
      %s61 = ssub.s32 112, 112
      %62 = vsyncadd [#allocation9], %s61
      %s64 = sshll.u32 [#allocation10], 4
      %s65 = int_to_ptr.vmem [resolvable:$true] %s64
      %67 = dma.hbm_to_vmem [thread:$0]  %s4, 112, %s65, [#allocation9]
    $region21: #{tpu_custom_call.1} parent=1 // pred_fallthru
      _
    // Predicated region
    $region22: #{tpu_custom_call.1} parent=1 // pred_check
      _
    $region23: #{tpu_custom_call.1} parent=1 // pred_check_branch
      %69 = sbr.rel (0) target = $region25
    $region24: #{tpu_custom_call.1} parent=1 // pred_region
      %70 = dma.done [#allocation3], 128
    $region25: #{tpu_custom_call.1} parent=1 // pred_fallthru
      _
    // Predicated region
    $region26: #{tpu_custom_call.1} parent=1 // pred_check
      _
    $region27: #{tpu_custom_call.1} parent=1 // pred_check_branch
      %72 = sbr.rel (0) target = $region29
    $region28: #{tpu_custom_call.1} parent=1 // pred_region
      %73 = dma.done [#allocation6], 1536
    $region29: #{tpu_custom_call.1} parent=1 // pred_fallthru
      _
    // Predicated region
    $region30: #{tpu_custom_call.1} parent=1 // pred_check
      _
    $region31: #{tpu_custom_call.1} parent=1 // pred_check_branch
      %75 = sbr.rel (0) target = $region33
    $region32: #{tpu_custom_call.1} parent=1 // pred_region
      %76 = dma.done [#allocation6], 64
    $region33: #{tpu_custom_call.1} parent=1 // pred_fallthru
      _
    // Predicated region
    $region34: #{tpu_custom_call.1} parent=1 // pred_check
      _
    $region35: #{tpu_custom_call.1} parent=1 // pred_check_branch
      %78 = sbr.rel (0) target = $region37
    $region36: #{tpu_custom_call.1} parent=1 // pred_region
      %79 = dma.done [#allocation9], 44800
    $region37: #{tpu_custom_call.1} parent=1 // pred_fallthru
      _
    // Predicated region
    $region38: #{tpu_custom_call.1} parent=1 // pred_check
      _
    $region39: #{tpu_custom_call.1} parent=1 // pred_check_branch
      %81 = sbr.rel (0) target = $region41
    $region40: #{tpu_custom_call.1} parent=1 // pred_region
      %82 = dma.done [#allocation9], 112
    $region41: #{tpu_custom_call.1} parent=1 // pred_fallthru
      _
    %v83 = vld [vmem:[#allocation2] sm:$0xff]
    %v84 = vld [vmem:[#allocation5] sm:$0xff]
    %v85 = vld [vmem:[#allocation5 + $0x8] sm:$0xff]
    %v86 = vld [vmem:[#allocation5 + $0x10] sm:$0xff]
    %v87 = vld [vmem:[#allocation5 + $0x18] sm:$0xff]
    %v88 = vld [vmem:[#allocation5 + $0x20] sm:$0xff]
    %v89 = vld [vmem:[#allocation5 + $0x28] sm:$0xff]
    %v90 = vld [vmem:[#allocation5 + $0x30] sm:$0xff]
    %v91 = vld [vmem:[#allocation5 + $0x38] sm:$0xff]
    %v92 = vld [vmem:[#allocation5 + $0x40] sm:$0xf]
    %v93 = vld [vmem:[#allocation5 + $0x48] sm:$0xf]
    %v94 = vld [vmem:[#allocation5 + $0x50] sm:$0xf]
    %v95 = vld [vmem:[#allocation5 + $0x58] sm:$0xf]
    %v96 = vld [vmem:[#allocation7] sm:$0xf]
    %v98 = vlaneseq
    %v99 = vshrl.u32 %v98, 7
    %v100 = vsub.s32 0, %v99
    %v101 = vrot.slane %v96, %v100
    %v102 = vlaneseq
    %v103 = vshrl.u32 %v102, 7
    %v104 = vsub.s32 1, %v103
    %v105 = vrot.slane %v96, %v104
    %v106 = vlaneseq
    %v107 = vshrl.u32 %v106, 7
    %v108 = vsub.s32 2, %v107
    %v109 = vrot.slane %v96, %v108
    %v110 = vlaneseq
    %v111 = vshrl.u32 %v110, 7
    %v112 = vsub.s32 3, %v111
    %v113 = vrot.slane %v96, %v112
    %vm118 = vcmask 162816
    %v120 = vsel %vm118, %v83, 0
    %vm122 = vcmask 1043456
    %v124 = vsel %vm122, %v92, 0
    %v127 = vsel %vm122, %v93, 0
    %v130 = vsel %vm122, %v94, 0
    %v133 = vsel %vm122, %v95, 0
    %135 = vmatprep.subr.mxu0 %v85
    %136 = vmatpush1.msra.mxu0 %v84
    %137 = vmatprep.subr.mxu0 %v89
    %138 = vmatpush1.msra.mxu0 %v88
    %139 = vmatprep.subr.mxu0 %v127
    %140 = vmatpush1.msra.mxu0 %v124
    %141 = vmatprep.subr.mxu0 0.0
    %142 = vmatpush1.msra.mxu0 0.0
    %143 = vmatprep.subr.mxu0 0.0
    %144 = vmatpush1.msra.mxu0 0.0
    %145 = vmatprep.subr.mxu0 0.0
    %146 = vmatpush1.msra.mxu0 0.0
    %147 = vmatprep.subr.mxu0 0.0
    %148 = vmatpush1.msra.mxu0 0.0
    %149 = vmatprep.subr.mxu0 0.0
    %150 = vmatpush1.msra.mxu0 0.0
    %151 = vmatprep.subr.mxu0 0.0
    %152 = vmatpush1.msra.mxu0 0.0
    %153 = vmatprep.subr.mxu0 0.0
    %154 = vmatpush1.msra.mxu0 0.0
    %155 = vmatprep.subr.mxu0 0.0
    %156 = vmatpush1.msra.mxu0 0.0
    %157 = vmatprep.subr.mxu0 0.0
    %158 = vmatpush1.msra.mxu0 0.0
    %159 = vmatprep.subr.mxu0 0.0
    %160 = vmatpush1.msra.mxu0 0.0
    %161 = vmatprep.subr.mxu0 0.0
    %162 = vmatpush1.msra.mxu0 0.0
    %163 = vmatprep.subr.mxu0 0.0
    %164 = vmatpush1.msra.mxu0 0.0
    %165 = vmatprep.subr.mxu0 0.0
    %166 = vmatpush1.msra.mxu0 0.0
    %167 = vmatprep.subr.mxu0 0.0
    %168 = vmatpush1.msra.mxu0 0.0
    %169 = vmatprep.subr.mxu0 0.0
    %170 = vmatpush1.msra.mxu0 0.0
    %171 = vmatprep.subr.mxu0 0.0
    %172 = vmatpush1.msra.mxu0 0.0
    %173 = vmatprep.subr.mxu0 0.0
    %174 = vmatpush1.msra.mxu0 0.0
    %175 = vmatprep.subr.mxu0 0.0
    %176 = vmatpush1.msra.mxu0 0.0
    %177 = vmatprep.subr.mxu0 0.0
    %178 = vmatpush1.msra.mxu0 0.0
    %179 = vmatprep.subr.mxu0 0.0
    %180 = vmatpush1.msra.mxu0 0.0
    %181 = vmatprep.subr.mxu0 0.0
    %182 = vmatpush1.msra.mxu0 0.0
    %183 = vmatprep.subr.mxu0 0.0
    %184 = vmatpush1.msra.mxu0 0.0
    %185 = vmatprep.subr.mxu0 0.0
    %186 = vmatpush1.msra.mxu0 0.0
    %187 = vmatprep.subr.mxu0 0.0
    %188 = vmatpush1.msra.mxu0 0.0
    %189 = vmatprep.subr.mxu0 0.0
    %190 = vmatpush1.msra.mxu0 0.0
    %191 = vmatprep.subr.mxu0 0.0
    %192 = vmatpush1.msra.mxu0 0.0
    %193 = vmatprep.subr.mxu0 0.0
    %194 = vmatpush1.msra.mxu0 0.0
    %195 = vmatprep.subr.mxu0 0.0
    %196 = vmatpush1.msra.mxu0 0.0
    %197 = vmatprep.subr.mxu0 0.0
    %198 = vmatpush1.msra.mxu0 0.0
    %199 = vmatprep.mubr.f32.mxu0 0.0
    %200 = vmatmul.mubr.f32.gmra.mrb[0].mxu0 %v120
    %v201 = vpop.f32.mrb[0].mxu0
    %v202 = vadd.f32 %v101, %v201
    %v203 = vpop.f32.mrb[0].mxu0
    %v204 = vadd.f32 %v105, %v203
    %205 = vdwg.mxu0
    %206 = vmatprep.subr.mxu0 %v87
    %207 = vmatpush1.msra.mxu0 %v86
    %208 = vmatprep.subr.mxu0 %v91
    %209 = vmatpush1.msra.mxu0 %v90
    %210 = vmatprep.subr.mxu0 %v133
    %211 = vmatpush1.msra.mxu0 %v130
    %212 = vmatprep.subr.mxu0 0.0
    %213 = vmatpush1.msra.mxu0 0.0
    %214 = vmatprep.subr.mxu0 0.0
    %215 = vmatpush1.msra.mxu0 0.0
    %216 = vmatprep.subr.mxu0 0.0
    %217 = vmatpush1.msra.mxu0 0.0
    %218 = vmatprep.subr.mxu0 0.0
    %219 = vmatpush1.msra.mxu0 0.0
    %220 = vmatprep.subr.mxu0 0.0
    %221 = vmatpush1.msra.mxu0 0.0
    %222 = vmatprep.subr.mxu0 0.0
    %223 = vmatpush1.msra.mxu0 0.0
    %224 = vmatprep.subr.mxu0 0.0
    %225 = vmatpush1.msra.mxu0 0.0
    %226 = vmatprep.subr.mxu0 0.0
    %227 = vmatpush1.msra.mxu0 0.0
    %228 = vmatprep.subr.mxu0 0.0
    %229 = vmatpush1.msra.mxu0 0.0
    %230 = vmatprep.subr.mxu0 0.0
    %231 = vmatpush1.msra.mxu0 0.0
    %232 = vmatprep.subr.mxu0 0.0
    %233 = vmatpush1.msra.mxu0 0.0
    %234 = vmatprep.subr.mxu0 0.0
    %235 = vmatpush1.msra.mxu0 0.0
    %236 = vmatprep.subr.mxu0 0.0
    %237 = vmatpush1.msra.mxu0 0.0
    %238 = vmatprep.subr.mxu0 0.0
    %239 = vmatpush1.msra.mxu0 0.0
    %240 = vmatprep.subr.mxu0 0.0
    %241 = vmatpush1.msra.mxu0 0.0
    %242 = vmatprep.subr.mxu0 0.0
    %243 = vmatpush1.msra.mxu0 0.0
    %244 = vmatprep.subr.mxu0 0.0
    %245 = vmatpush1.msra.mxu0 0.0
    %246 = vmatprep.subr.mxu0 0.0
    %247 = vmatpush1.msra.mxu0 0.0
    %248 = vmatprep.subr.mxu0 0.0
    %249 = vmatpush1.msra.mxu0 0.0
    %250 = vmatprep.subr.mxu0 0.0
    %251 = vmatpush1.msra.mxu0 0.0
    %252 = vmatprep.subr.mxu0 0.0
    %253 = vmatpush1.msra.mxu0 0.0
    %254 = vmatprep.subr.mxu0 0.0
    %255 = vmatpush1.msra.mxu0 0.0
    %256 = vmatprep.subr.mxu0 0.0
    %257 = vmatpush1.msra.mxu0 0.0
    %258 = vmatprep.subr.mxu0 0.0
    %259 = vmatpush1.msra.mxu0 0.0
    %260 = vmatprep.subr.mxu0 0.0
    %261 = vmatpush1.msra.mxu0 0.0
    %262 = vmatprep.subr.mxu0 0.0
    %263 = vmatpush1.msra.mxu0 0.0
    %264 = vmatprep.subr.mxu0 0.0
    %265 = vmatpush1.msra.mxu0 0.0
    %266 = vmatprep.subr.mxu0 0.0
    %267 = vmatpush1.msra.mxu0 0.0
    %268 = vmatprep.subr.mxu0 0.0
    %269 = vmatpush1.msra.mxu0 0.0
    %270 = vmatprep.mubr.f32.mxu0 0.0
    %271 = vmatmul.mubr.f32.gmra.mrb[0].mxu0 %v120
    %v272 = vpop.f32.mrb[0].mxu0
    %v273 = vadd.f32 %v109, %v272
    %v274 = vpop.f32.mrb[0].mxu0
    %v275 = vadd.f32 %v113, %v274
    %276 = vdwg.mxu0
    %v277 = vmax.f32 %v202, 0.0
    %v278 = vmax.f32 %v204, 0.0
    %v279 = vmax.f32 %v273, 0.0
    %v280 = vmax.f32 %v275, 0.0
    %v281 = vld [vmem:[#allocation8] sm:$0xff]
    %v282 = vld [vmem:[#allocation8 + $0x8] sm:$0xff]
    %v283 = vld [vmem:[#allocation8 + $0x10] sm:$0xff]
    %v284 = vld [vmem:[#allocation8 + $0x18] sm:$0xff]
    %v285 = vld [vmem:[#allocation8 + $0x20] sm:$0xff]
    %v286 = vld [vmem:[#allocation8 + $0x28] sm:$0xff]
    %v287 = vld [vmem:[#allocation8 + $0x30] sm:$0xff]
    %v288 = vld [vmem:[#allocation8 + $0x38] sm:$0xff]
    %v289 = vld [vmem:[#allocation8 + $0x40] sm:$0xff]
    %v290 = vld [vmem:[#allocation8 + $0x48] sm:$0xff]
    %v291 = vld [vmem:[#allocation8 + $0x50] sm:$0xff]
    %v292 = vld [vmem:[#allocation8 + $0x58] sm:$0xff]
    %v293 = vld [vmem:[#allocation8 + $0x60] sm:$0xff]
    %v294 = vld [vmem:[#allocation8 + $0x68] sm:$0xff]
    %v295 = vld [vmem:[#allocation8 + $0x70] sm:$0xff]
    %v296 = vld [vmem:[#allocation8 + $0x78] sm:$0xff]
    %v297 = vld [vmem:[#allocation8 + $0x80] sm:$0xff]
    %v298 = vld [vmem:[#allocation8 + $0x88] sm:$0xff]
    %v299 = vld [vmem:[#allocation8 + $0x90] sm:$0xff]
    %v300 = vld [vmem:[#allocation8 + $0x98] sm:$0xff]
    %v301 = vld [vmem:[#allocation8 + $0xa0] sm:$0xff]
    %v302 = vld [vmem:[#allocation8 + $0xa8] sm:$0xff]
    %v303 = vld [vmem:[#allocation8 + $0xb0] sm:$0xff]
    %v304 = vld [vmem:[#allocation8 + $0xb8] sm:$0xff]
    %v305 = vld [vmem:[#allocation8 + $0xc0] sm:$0xff]
    %v306 = vld [vmem:[#allocation8 + $0xc8] sm:$0xff]
    %v307 = vld [vmem:[#allocation8 + $0xd0] sm:$0xff]
    %v308 = vld [vmem:[#allocation8 + $0xd8] sm:$0xff]
    %v309 = vld [vmem:[#allocation8 + $0xe0] sm:$0xff]
    %v310 = vld [vmem:[#allocation8 + $0xe8] sm:$0xff]
    %v311 = vld [vmem:[#allocation8 + $0xf0] sm:$0xff]
    %v312 = vld [vmem:[#allocation8 + $0xf8] sm:$0xff]
    %v313 = vld [vmem:[#allocation8 + $0x100] sm:$0xff]
    %v314 = vld [vmem:[#allocation8 + $0x108] sm:$0xff]
    %v315 = vld [vmem:[#allocation8 + $0x110] sm:$0xff]
    %v316 = vld [vmem:[#allocation8 + $0x118] sm:$0xff]
    %v317 = vld [vmem:[#allocation8 + $0x120] sm:$0xff]
    %v318 = vld [vmem:[#allocation8 + $0x128] sm:$0xff]
    %v319 = vld [vmem:[#allocation8 + $0x130] sm:$0xff]
    %v320 = vld [vmem:[#allocation8 + $0x138] sm:$0xff]
    %v321 = vld [vmem:[#allocation8 + $0x140] sm:$0xff]
    %v322 = vld [vmem:[#allocation8 + $0x148] sm:$0xff]
    %v323 = vld [vmem:[#allocation8 + $0x150] sm:$0xff]
    %v324 = vld [vmem:[#allocation8 + $0x158] sm:$0xff]
    %v325 = vld [vmem:[#allocation8 + $0x160] sm:$0xff]
    %v326 = vld [vmem:[#allocation8 + $0x168] sm:$0xff]
    %v327 = vld [vmem:[#allocation8 + $0x170] sm:$0xff]
    %v328 = vld [vmem:[#allocation8 + $0x178] sm:$0xff]
    %v329 = vld [vmem:[#allocation8 + $0x180] sm:$0xff]
    %v330 = vld [vmem:[#allocation8 + $0x188] sm:$0xff]
    %v331 = vld [vmem:[#allocation8 + $0x190] sm:$0xff]
    %v332 = vld [vmem:[#allocation8 + $0x198] sm:$0xff]
    %v333 = vld [vmem:[#allocation8 + $0x1a0] sm:$0xff]
    %v334 = vld [vmem:[#allocation8 + $0x1a8] sm:$0xff]
    %v335 = vld [vmem:[#allocation8 + $0x1b0] sm:$0xff]
    %v336 = vld [vmem:[#allocation8 + $0x1b8] sm:$0xff]
    %v337 = vld [vmem:[#allocation8 + $0x1c0] sm:$0xff]
    %v338 = vld [vmem:[#allocation8 + $0x1c8] sm:$0xff]
    %v339 = vld [vmem:[#allocation8 + $0x1d0] sm:$0xff]
    %v340 = vld [vmem:[#allocation8 + $0x1d8] sm:$0xff]
    %v341 = vld [vmem:[#allocation8 + $0x1e0] sm:$0xff]
    %v342 = vld [vmem:[#allocation8 + $0x1e8] sm:$0xff]
    %v343 = vld [vmem:[#allocation8 + $0x1f0] sm:$0xff]
    %v344 = vld [vmem:[#allocation8 + $0x1f8] sm:$0xff]
    %v345 = vld [vmem:[#allocation8 + $0x200] sm:$0xff]
    %v346 = vld [vmem:[#allocation8 + $0x208] sm:$0xff]
    %v347 = vld [vmem:[#allocation8 + $0x210] sm:$0xff]
    %v348 = vld [vmem:[#allocation8 + $0x218] sm:$0xff]
    %v349 = vld [vmem:[#allocation8 + $0x220] sm:$0xff]
    %v350 = vld [vmem:[#allocation8 + $0x228] sm:$0xff]
    %v351 = vld [vmem:[#allocation8 + $0x230] sm:$0xff]
    %v352 = vld [vmem:[#allocation8 + $0x238] sm:$0xff]
    %v353 = vld [vmem:[#allocation8 + $0x240] sm:$0xff]
    %v354 = vld [vmem:[#allocation8 + $0x248] sm:$0xff]
    %v355 = vld [vmem:[#allocation8 + $0x250] sm:$0xff]
    %v356 = vld [vmem:[#allocation8 + $0x258] sm:$0xff]
    %v357 = vld [vmem:[#allocation8 + $0x260] sm:$0xff]
    %v358 = vld [vmem:[#allocation8 + $0x268] sm:$0xff]
    %v359 = vld [vmem:[#allocation8 + $0x270] sm:$0xff]
    %v360 = vld [vmem:[#allocation8 + $0x278] sm:$0xff]
    %v361 = vld [vmem:[#allocation8 + $0x280] sm:$0xff]
    %v362 = vld [vmem:[#allocation8 + $0x288] sm:$0xff]
    %v363 = vld [vmem:[#allocation8 + $0x290] sm:$0xff]
    %v364 = vld [vmem:[#allocation8 + $0x298] sm:$0xff]
    %v365 = vld [vmem:[#allocation8 + $0x2a0] sm:$0xff]
    %v366 = vld [vmem:[#allocation8 + $0x2a8] sm:$0xff]
    %v367 = vld [vmem:[#allocation8 + $0x2b0] sm:$0xff]
    %v368 = vld [vmem:[#allocation8 + $0x2b8] sm:$0xff]
    %v369 = vld [vmem:[#allocation8 + $0x2c0] sm:$0xff]
    %v370 = vld [vmem:[#allocation8 + $0x2c8] sm:$0xff]
    %v371 = vld [vmem:[#allocation8 + $0x2d0] sm:$0xff]
    %v372 = vld [vmem:[#allocation8 + $0x2d8] sm:$0xff]
    %v373 = vld [vmem:[#allocation8 + $0x2e0] sm:$0xff]
    %v374 = vld [vmem:[#allocation8 + $0x2e8] sm:$0xff]
    %v375 = vld [vmem:[#allocation8 + $0x2f0] sm:$0xff]
    %v376 = vld [vmem:[#allocation8 + $0x2f8] sm:$0xff]
    %v377 = vld [vmem:[#allocation8 + $0x300] sm:$0xff]
    %v378 = vld [vmem:[#allocation8 + $0x308] sm:$0xff]
    %v379 = vld [vmem:[#allocation8 + $0x310] sm:$0xff]
    %v380 = vld [vmem:[#allocation8 + $0x318] sm:$0xff]
    %v381 = vld [vmem:[#allocation8 + $0x320] sm:$0xff]
    %v382 = vld [vmem:[#allocation8 + $0x328] sm:$0xff]
    %v383 = vld [vmem:[#allocation8 + $0x330] sm:$0xff]
    %v384 = vld [vmem:[#allocation8 + $0x338] sm:$0xff]
    %v385 = vld [vmem:[#allocation8 + $0x340] sm:$0xff]
    %v386 = vld [vmem:[#allocation8 + $0x348] sm:$0xff]
    %v387 = vld [vmem:[#allocation8 + $0x350] sm:$0xff]
    %v388 = vld [vmem:[#allocation8 + $0x358] sm:$0xff]
    %v389 = vld [vmem:[#allocation8 + $0x360] sm:$0xff]
    %v390 = vld [vmem:[#allocation8 + $0x368] sm:$0xff]
    %v391 = vld [vmem:[#allocation8 + $0x370] sm:$0xff]
    %v392 = vld [vmem:[#allocation8 + $0x378] sm:$0xff]
    %v393 = vld [vmem:[#allocation8 + $0x380] sm:$0xff]
    %v394 = vld [vmem:[#allocation8 + $0x388] sm:$0xff]
    %v395 = vld [vmem:[#allocation8 + $0x390] sm:$0xff]
    %v396 = vld [vmem:[#allocation8 + $0x398] sm:$0xff]
    %v397 = vld [vmem:[#allocation8 + $0x3a0] sm:$0xff]
    %v398 = vld [vmem:[#allocation8 + $0x3a8] sm:$0xff]
    %v399 = vld [vmem:[#allocation8 + $0x3b0] sm:$0xff]
    %v400 = vld [vmem:[#allocation8 + $0x3b8] sm:$0xff]
    %v401 = vld [vmem:[#allocation8 + $0x3c0] sm:$0xff]
    %v402 = vld [vmem:[#allocation8 + $0x3c8] sm:$0xff]
    %v403 = vld [vmem:[#allocation8 + $0x3d0] sm:$0xff]
    %v404 = vld [vmem:[#allocation8 + $0x3d8] sm:$0xff]
    %v405 = vld [vmem:[#allocation8 + $0x3e0] sm:$0xff]
    %v406 = vld [vmem:[#allocation8 + $0x3e8] sm:$0xff]
    %v407 = vld [vmem:[#allocation8 + $0x3f0] sm:$0xff]
    %v408 = vld [vmem:[#allocation8 + $0x3f8] sm:$0xff]
    %v409 = vld [vmem:[#allocation8 + $0x400] sm:$0xff]
    %v410 = vld [vmem:[#allocation8 + $0x408] sm:$0xff]
    %v411 = vld [vmem:[#allocation8 + $0x410] sm:$0xff]
    %v412 = vld [vmem:[#allocation8 + $0x418] sm:$0xff]
    %v413 = vld [vmem:[#allocation8 + $0x420] sm:$0xff]
    %v414 = vld [vmem:[#allocation8 + $0x428] sm:$0xff]
    %v415 = vld [vmem:[#allocation8 + $0x430] sm:$0xff]
    %v416 = vld [vmem:[#allocation8 + $0x438] sm:$0xff]
    %v417 = vld [vmem:[#allocation8 + $0x440] sm:$0xff]
    %v418 = vld [vmem:[#allocation8 + $0x448] sm:$0xff]
    %v419 = vld [vmem:[#allocation8 + $0x450] sm:$0xff]
    %v420 = vld [vmem:[#allocation8 + $0x458] sm:$0xff]
    %v421 = vld [vmem:[#allocation8 + $0x460] sm:$0xff]
    %v422 = vld [vmem:[#allocation8 + $0x468] sm:$0xff]
    %v423 = vld [vmem:[#allocation8 + $0x470] sm:$0xff]
    %v424 = vld [vmem:[#allocation8 + $0x478] sm:$0xff]
    %v425 = vld [vmem:[#allocation8 + $0x480] sm:$0xff]
    %v426 = vld [vmem:[#allocation8 + $0x488] sm:$0xff]
    %v427 = vld [vmem:[#allocation8 + $0x490] sm:$0xff]
    %v428 = vld [vmem:[#allocation8 + $0x498] sm:$0xff]
    %v429 = vld [vmem:[#allocation8 + $0x4a0] sm:$0xff]
    %v430 = vld [vmem:[#allocation8 + $0x4a8] sm:$0xff]
    %v431 = vld [vmem:[#allocation8 + $0x4b0] sm:$0xff]
    %v432 = vld [vmem:[#allocation8 + $0x4b8] sm:$0xff]
    %v433 = vld [vmem:[#allocation8 + $0x4c0] sm:$0xff]
    %v434 = vld [vmem:[#allocation8 + $0x4c8] sm:$0xff]
    %v435 = vld [vmem:[#allocation8 + $0x4d0] sm:$0xff]
    %v436 = vld [vmem:[#allocation8 + $0x4d8] sm:$0xff]
    %v437 = vld [vmem:[#allocation8 + $0x4e0] sm:$0xff]
    %v438 = vld [vmem:[#allocation8 + $0x4e8] sm:$0xff]
    %v439 = vld [vmem:[#allocation8 + $0x4f0] sm:$0xff]
    %v440 = vld [vmem:[#allocation8 + $0x4f8] sm:$0xff]
    %v441 = vld [vmem:[#allocation8 + $0x500] sm:$0xff]
    %v442 = vld [vmem:[#allocation8 + $0x508] sm:$0xff]
    %v443 = vld [vmem:[#allocation8 + $0x510] sm:$0xff]
    %v444 = vld [vmem:[#allocation8 + $0x518] sm:$0xff]
    %v445 = vld [vmem:[#allocation8 + $0x520] sm:$0xff]
    %v446 = vld [vmem:[#allocation8 + $0x528] sm:$0xff]
    %v447 = vld [vmem:[#allocation8 + $0x530] sm:$0xff]
    %v448 = vld [vmem:[#allocation8 + $0x538] sm:$0xff]
    %v449 = vld [vmem:[#allocation8 + $0x540] sm:$0xff]
    %v450 = vld [vmem:[#allocation8 + $0x548] sm:$0xff]
    %v451 = vld [vmem:[#allocation8 + $0x550] sm:$0xff]
    %v452 = vld [vmem:[#allocation8 + $0x558] sm:$0xff]
    %v453 = vld [vmem:[#allocation8 + $0x560] sm:$0xff]
    %v454 = vld [vmem:[#allocation8 + $0x568] sm:$0xff]
    %v455 = vld [vmem:[#allocation8 + $0x570] sm:$0xff]
    %v456 = vld [vmem:[#allocation8 + $0x578] sm:$0xff]
    %v457 = vld [vmem:[#allocation8 + $0x580] sm:$0xff]
    %v458 = vld [vmem:[#allocation8 + $0x588] sm:$0xff]
    %v459 = vld [vmem:[#allocation8 + $0x590] sm:$0xff]
    %v460 = vld [vmem:[#allocation8 + $0x598] sm:$0xff]
    %v461 = vld [vmem:[#allocation8 + $0x5a0] sm:$0xff]
    %v462 = vld [vmem:[#allocation8 + $0x5a8] sm:$0xff]
    %v463 = vld [vmem:[#allocation8 + $0x5b0] sm:$0xff]
    %v464 = vld [vmem:[#allocation8 + $0x5b8] sm:$0xff]
    %v465 = vld [vmem:[#allocation8 + $0x5c0] sm:$0xff]
    %v466 = vld [vmem:[#allocation8 + $0x5c8] sm:$0xff]
    %v467 = vld [vmem:[#allocation8 + $0x5d0] sm:$0xff]
    %v468 = vld [vmem:[#allocation8 + $0x5d8] sm:$0xff]
    %v469 = vld [vmem:[#allocation8 + $0x5e0] sm:$0xff]
    %v470 = vld [vmem:[#allocation8 + $0x5e8] sm:$0xff]
    %v471 = vld [vmem:[#allocation8 + $0x5f0] sm:$0xff]
    %v472 = vld [vmem:[#allocation8 + $0x5f8] sm:$0xff]
    %v473 = vld [vmem:[#allocation8 + $0x600] sm:$0xff]
    %v474 = vld [vmem:[#allocation8 + $0x608] sm:$0xff]
    %v475 = vld [vmem:[#allocation8 + $0x610] sm:$0xff]
    %v476 = vld [vmem:[#allocation8 + $0x618] sm:$0xff]
    %v477 = vld [vmem:[#allocation8 + $0x620] sm:$0xff]
    %v478 = vld [vmem:[#allocation8 + $0x628] sm:$0xff]
    %v479 = vld [vmem:[#allocation8 + $0x630] sm:$0xff]
    %v480 = vld [vmem:[#allocation8 + $0x638] sm:$0xff]
    %v481 = vld [vmem:[#allocation8 + $0x640] sm:$0xff]
    %v482 = vld [vmem:[#allocation8 + $0x648] sm:$0xff]
    %v483 = vld [vmem:[#allocation8 + $0x650] sm:$0xff]
    %v484 = vld [vmem:[#allocation8 + $0x658] sm:$0xff]
    %v485 = vld [vmem:[#allocation8 + $0x660] sm:$0xff]
    %v486 = vld [vmem:[#allocation8 + $0x668] sm:$0xff]
    %v487 = vld [vmem:[#allocation8 + $0x670] sm:$0xff]
    %v488 = vld [vmem:[#allocation8 + $0x678] sm:$0xff]
    %v489 = vld [vmem:[#allocation8 + $0x680] sm:$0xff]
    %v490 = vld [vmem:[#allocation8 + $0x688] sm:$0xff]
    %v491 = vld [vmem:[#allocation8 + $0x690] sm:$0xff]
    %v492 = vld [vmem:[#allocation8 + $0x698] sm:$0xff]
    %v493 = vld [vmem:[#allocation8 + $0x6a0] sm:$0xff]
    %v494 = vld [vmem:[#allocation8 + $0x6a8] sm:$0xff]
    %v495 = vld [vmem:[#allocation8 + $0x6b0] sm:$0xff]
    %v496 = vld [vmem:[#allocation8 + $0x6b8] sm:$0xff]
    %v497 = vld [vmem:[#allocation8 + $0x6c0] sm:$0xff]
    %v498 = vld [vmem:[#allocation8 + $0x6c8] sm:$0xff]
    %v499 = vld [vmem:[#allocation8 + $0x6d0] sm:$0xff]
    %v500 = vld [vmem:[#allocation8 + $0x6d8] sm:$0xff]
    %v501 = vld [vmem:[#allocation8 + $0x6e0] sm:$0xff]
    %v502 = vld [vmem:[#allocation8 + $0x6e8] sm:$0xff]
    %v503 = vld [vmem:[#allocation8 + $0x6f0] sm:$0xff]
    %v504 = vld [vmem:[#allocation8 + $0x6f8] sm:$0xff]
    %v505 = vld [vmem:[#allocation8 + $0x700] sm:$0xff]
    %v506 = vld [vmem:[#allocation8 + $0x708] sm:$0xff]
    %v507 = vld [vmem:[#allocation8 + $0x710] sm:$0xff]
    %v508 = vld [vmem:[#allocation8 + $0x718] sm:$0xff]
    %v509 = vld [vmem:[#allocation8 + $0x720] sm:$0xff]
    %v510 = vld [vmem:[#allocation8 + $0x728] sm:$0xff]
    %v511 = vld [vmem:[#allocation8 + $0x730] sm:$0xff]
    %v512 = vld [vmem:[#allocation8 + $0x738] sm:$0xff]
    %v513 = vld [vmem:[#allocation8 + $0x740] sm:$0xff]
    %v514 = vld [vmem:[#allocation8 + $0x748] sm:$0xff]
    %v515 = vld [vmem:[#allocation8 + $0x750] sm:$0xff]
    %v516 = vld [vmem:[#allocation8 + $0x758] sm:$0xff]
    %v517 = vld [vmem:[#allocation8 + $0x760] sm:$0xff]
    %v518 = vld [vmem:[#allocation8 + $0x768] sm:$0xff]
    %v519 = vld [vmem:[#allocation8 + $0x770] sm:$0xff]
    %v520 = vld [vmem:[#allocation8 + $0x778] sm:$0xff]
    %v521 = vld [vmem:[#allocation8 + $0x780] sm:$0xff]
    %v522 = vld [vmem:[#allocation8 + $0x788] sm:$0xff]
    %v523 = vld [vmem:[#allocation8 + $0x790] sm:$0xff]
    %v524 = vld [vmem:[#allocation8 + $0x798] sm:$0xff]
    %v525 = vld [vmem:[#allocation8 + $0x7a0] sm:$0xff]
    %v526 = vld [vmem:[#allocation8 + $0x7a8] sm:$0xff]
    %v527 = vld [vmem:[#allocation8 + $0x7b0] sm:$0xff]
    %v528 = vld [vmem:[#allocation8 + $0x7b8] sm:$0xff]
    %v529 = vld [vmem:[#allocation8 + $0x7c0] sm:$0xff]
    %v530 = vld [vmem:[#allocation8 + $0x7c8] sm:$0xff]
    %v531 = vld [vmem:[#allocation8 + $0x7d0] sm:$0xff]
    %v532 = vld [vmem:[#allocation8 + $0x7d8] sm:$0xff]
    %v533 = vld [vmem:[#allocation8 + $0x7e0] sm:$0xff]
    %v534 = vld [vmem:[#allocation8 + $0x7e8] sm:$0xff]
    %v535 = vld [vmem:[#allocation8 + $0x7f0] sm:$0xff]
    %v536 = vld [vmem:[#allocation8 + $0x7f8] sm:$0xff]
    %v537 = vld [vmem:[#allocation8 + $0x800] sm:$0xff]
    %v538 = vld [vmem:[#allocation8 + $0x808] sm:$0xff]
    %v539 = vld [vmem:[#allocation8 + $0x810] sm:$0xff]
    %v540 = vld [vmem:[#allocation8 + $0x818] sm:$0xff]
    %v541 = vld [vmem:[#allocation8 + $0x820] sm:$0xff]
    %v542 = vld [vmem:[#allocation8 + $0x828] sm:$0xff]
    %v543 = vld [vmem:[#allocation8 + $0x830] sm:$0xff]
    %v544 = vld [vmem:[#allocation8 + $0x838] sm:$0xff]
    %v545 = vld [vmem:[#allocation8 + $0x840] sm:$0xff]
    %v546 = vld [vmem:[#allocation8 + $0x848] sm:$0xff]
    %v547 = vld [vmem:[#allocation8 + $0x850] sm:$0xff]
    %v548 = vld [vmem:[#allocation8 + $0x858] sm:$0xff]
    %v549 = vld [vmem:[#allocation8 + $0x860] sm:$0xff]
    %v550 = vld [vmem:[#allocation8 + $0x868] sm:$0xff]
    %v551 = vld [vmem:[#allocation8 + $0x870] sm:$0xff]
    %v552 = vld [vmem:[#allocation8 + $0x878] sm:$0xff]
    %v553 = vld [vmem:[#allocation8 + $0x880] sm:$0xff]
    %v554 = vld [vmem:[#allocation8 + $0x888] sm:$0xff]
    %v555 = vld [vmem:[#allocation8 + $0x890] sm:$0xff]
    %v556 = vld [vmem:[#allocation8 + $0x898] sm:$0xff]
    %v557 = vld [vmem:[#allocation8 + $0x8a0] sm:$0xff]
    %v558 = vld [vmem:[#allocation8 + $0x8a8] sm:$0xff]
    %v559 = vld [vmem:[#allocation8 + $0x8b0] sm:$0xff]
    %v560 = vld [vmem:[#allocation8 + $0x8b8] sm:$0xff]
    %v561 = vld [vmem:[#allocation8 + $0x8c0] sm:$0xff]
    %v562 = vld [vmem:[#allocation8 + $0x8c8] sm:$0xff]
    %v563 = vld [vmem:[#allocation8 + $0x8d0] sm:$0xff]
    %v564 = vld [vmem:[#allocation8 + $0x8d8] sm:$0xff]
    %v565 = vld [vmem:[#allocation8 + $0x8e0] sm:$0xff]
    %v566 = vld [vmem:[#allocation8 + $0x8e8] sm:$0xff]
    %v567 = vld [vmem:[#allocation8 + $0x8f0] sm:$0xff]
    %v568 = vld [vmem:[#allocation8 + $0x8f8] sm:$0xff]
    %v569 = vld [vmem:[#allocation8 + $0x900] sm:$0xff]
    %v570 = vld [vmem:[#allocation8 + $0x908] sm:$0xff]
    %v571 = vld [vmem:[#allocation8 + $0x910] sm:$0xff]
    %v572 = vld [vmem:[#allocation8 + $0x918] sm:$0xff]
    %v573 = vld [vmem:[#allocation8 + $0x920] sm:$0xff]
    %v574 = vld [vmem:[#allocation8 + $0x928] sm:$0xff]
    %v575 = vld [vmem:[#allocation8 + $0x930] sm:$0xff]
    %v576 = vld [vmem:[#allocation8 + $0x938] sm:$0xff]
    %v577 = vld [vmem:[#allocation8 + $0x940] sm:$0xff]
    %v578 = vld [vmem:[#allocation8 + $0x948] sm:$0xff]
    %v579 = vld [vmem:[#allocation8 + $0x950] sm:$0xff]
    %v580 = vld [vmem:[#allocation8 + $0x958] sm:$0xff]
    %v581 = vld [vmem:[#allocation8 + $0x960] sm:$0xff]
    %v582 = vld [vmem:[#allocation8 + $0x968] sm:$0xff]
    %v583 = vld [vmem:[#allocation8 + $0x970] sm:$0xff]
    %v584 = vld [vmem:[#allocation8 + $0x978] sm:$0xff]
    %v585 = vld [vmem:[#allocation8 + $0x980] sm:$0xff]
    %v586 = vld [vmem:[#allocation8 + $0x988] sm:$0xff]
    %v587 = vld [vmem:[#allocation8 + $0x990] sm:$0xff]
    %v588 = vld [vmem:[#allocation8 + $0x998] sm:$0xff]
    %v589 = vld [vmem:[#allocation8 + $0x9a0] sm:$0xff]
    %v590 = vld [vmem:[#allocation8 + $0x9a8] sm:$0xff]
    %v591 = vld [vmem:[#allocation8 + $0x9b0] sm:$0xff]
    %v592 = vld [vmem:[#allocation8 + $0x9b8] sm:$0xff]
    %v593 = vld [vmem:[#allocation8 + $0x9c0] sm:$0xff]
    %v594 = vld [vmem:[#allocation8 + $0x9c8] sm:$0xff]
    %v595 = vld [vmem:[#allocation8 + $0x9d0] sm:$0xff]
    %v596 = vld [vmem:[#allocation8 + $0x9d8] sm:$0xff]
    %v597 = vld [vmem:[#allocation8 + $0x9e0] sm:$0xff]
    %v598 = vld [vmem:[#allocation8 + $0x9e8] sm:$0xff]
    %v599 = vld [vmem:[#allocation8 + $0x9f0] sm:$0xff]
    %v600 = vld [vmem:[#allocation8 + $0x9f8] sm:$0xff]
    %v601 = vld [vmem:[#allocation8 + $0xa00] sm:$0xff]
    %v602 = vld [vmem:[#allocation8 + $0xa08] sm:$0xff]
    %v603 = vld [vmem:[#allocation8 + $0xa10] sm:$0xff]
    %v604 = vld [vmem:[#allocation8 + $0xa18] sm:$0xff]
    %v605 = vld [vmem:[#allocation8 + $0xa20] sm:$0xff]
    %v606 = vld [vmem:[#allocation8 + $0xa28] sm:$0xff]
    %v607 = vld [vmem:[#allocation8 + $0xa30] sm:$0xff]
    %v608 = vld [vmem:[#allocation8 + $0xa38] sm:$0xff]
    %v609 = vld [vmem:[#allocation8 + $0xa40] sm:$0xff]
    %v610 = vld [vmem:[#allocation8 + $0xa48] sm:$0xff]
    %v611 = vld [vmem:[#allocation8 + $0xa50] sm:$0xff]
    %v612 = vld [vmem:[#allocation8 + $0xa58] sm:$0xff]
    %v613 = vld [vmem:[#allocation8 + $0xa60] sm:$0xff]
    %v614 = vld [vmem:[#allocation8 + $0xa68] sm:$0xff]
    %v615 = vld [vmem:[#allocation8 + $0xa70] sm:$0xff]
    %v616 = vld [vmem:[#allocation8 + $0xa78] sm:$0xff]
    %v617 = vld [vmem:[#allocation8 + $0xa80] sm:$0xff]
    %v618 = vld [vmem:[#allocation8 + $0xa88] sm:$0xff]
    %v619 = vld [vmem:[#allocation8 + $0xa90] sm:$0xff]
    %v620 = vld [vmem:[#allocation8 + $0xa98] sm:$0xff]
    %v621 = vld [vmem:[#allocation8 + $0xaa0] sm:$0xff]
    %v622 = vld [vmem:[#allocation8 + $0xaa8] sm:$0xff]
    %v623 = vld [vmem:[#allocation8 + $0xab0] sm:$0xff]
    %v624 = vld [vmem:[#allocation8 + $0xab8] sm:$0xff]
    %v625 = vld [vmem:[#allocation8 + $0xac0] sm:$0xff]
    %v626 = vld [vmem:[#allocation8 + $0xac8] sm:$0xff]
    %v627 = vld [vmem:[#allocation8 + $0xad0] sm:$0xff]
    %v628 = vld [vmem:[#allocation8 + $0xad8] sm:$0xff]
    %v629 = vld [vmem:[#allocation8 + $0xae0] sm:$0xff]
    %v630 = vld [vmem:[#allocation8 + $0xae8] sm:$0xff]
    %v631 = vld [vmem:[#allocation10] sm:$0xff]
    %v633 = vlaneseq
    %v634 = vshrl.u32 %v633, 7
    %v635 = vsub.s32 0, %v634
    %v636 = vrot.slane %v631, %v635
    %v637 = vlaneseq
    %v638 = vshrl.u32 %v637, 7
    %v639 = vsub.s32 1, %v638
    %v640 = vrot.slane %v631, %v639
    %v641 = vlaneseq
    %v642 = vshrl.u32 %v641, 7
    %v643 = vsub.s32 2, %v642
    %v644 = vrot.slane %v631, %v643
    %v645 = vlaneseq
    %v646 = vshrl.u32 %v645, 7
    %v647 = vsub.s32 3, %v646
    %v648 = vrot.slane %v631, %v647
    %v649 = vlaneseq
    %v650 = vshrl.u32 %v649, 7
    %v651 = vsub.s32 4, %v650
    %v652 = vrot.slane %v631, %v651
    %v653 = vlaneseq
    %v654 = vshrl.u32 %v653, 7
    %v655 = vsub.s32 5, %v654
    %v656 = vrot.slane %v631, %v655
    %v657 = vlaneseq
    %v658 = vshrl.u32 %v657, 7
    %v659 = vsub.s32 6, %v658
    %v660 = vrot.slane %v631, %v659
    %vm668 = vcmask 130048
    %v670 = vsel %vm668, %v280, 0
    %672 = vmatprep.subr.mxu0 %v282
    %673 = vmatpush1.msra.mxu0 %v281
    %674 = vmatprep.subr.mxu0 %v289
    %675 = vmatpush1.msra.mxu0 %v288
    %676 = vmatprep.subr.mxu0 %v296
    %677 = vmatpush1.msra.mxu0 %v295
    %678 = vmatprep.subr.mxu0 %v303
    %679 = vmatpush1.msra.mxu0 %v302
    %680 = vmatprep.subr.mxu0 %v310
    %681 = vmatpush1.msra.mxu0 %v309
    %682 = vmatprep.subr.mxu0 %v317
    %683 = vmatpush1.msra.mxu0 %v316
    %684 = vmatprep.subr.mxu0 %v324
    %685 = vmatpush1.msra.mxu0 %v323
    %686 = vmatprep.subr.mxu0 %v331
    %687 = vmatpush1.msra.mxu0 %v330
    %688 = vmatprep.subr.mxu0 %v338
    %689 = vmatpush1.msra.mxu0 %v337
    %690 = vmatprep.subr.mxu0 %v345
    %691 = vmatpush1.msra.mxu0 %v344
    %692 = vmatprep.subr.mxu0 %v352
    %693 = vmatpush1.msra.mxu0 %v351
    %694 = vmatprep.subr.mxu0 %v359
    %695 = vmatpush1.msra.mxu0 %v358
    %696 = vmatprep.subr.mxu0 %v366
    %697 = vmatpush1.msra.mxu0 %v365
    %698 = vmatprep.subr.mxu0 %v373
    %699 = vmatpush1.msra.mxu0 %v372
    %700 = vmatprep.subr.mxu0 %v380
    %701 = vmatpush1.msra.mxu0 %v379
    %702 = vmatprep.subr.mxu0 %v387
    %703 = vmatpush1.msra.mxu0 %v386
    %704 = vmatprep.subr.mxu0 %v394
    %705 = vmatpush1.msra.mxu0 %v393
    %706 = vmatprep.subr.mxu0 %v401
    %707 = vmatpush1.msra.mxu0 %v400
    %708 = vmatprep.subr.mxu0 %v408
    %709 = vmatpush1.msra.mxu0 %v407
    %710 = vmatprep.subr.mxu0 %v415
    %711 = vmatpush1.msra.mxu0 %v414
    %712 = vmatprep.subr.mxu0 %v422
    %713 = vmatpush1.msra.mxu0 %v421
    %714 = vmatprep.subr.mxu0 %v429
    %715 = vmatpush1.msra.mxu0 %v428
    %716 = vmatprep.subr.mxu0 %v436
    %717 = vmatpush1.msra.mxu0 %v435
    %718 = vmatprep.subr.mxu0 %v443
    %719 = vmatpush1.msra.mxu0 %v442
    %720 = vmatprep.subr.mxu0 %v450
    %721 = vmatpush1.msra.mxu0 %v449
    %722 = vmatprep.subr.mxu0 %v457
    %723 = vmatpush1.msra.mxu0 %v456
    %724 = vmatprep.subr.mxu0 %v464
    %725 = vmatpush1.msra.mxu0 %v463
    %726 = vmatprep.subr.mxu0 %v471
    %727 = vmatpush1.msra.mxu0 %v470
    %728 = vmatprep.subr.mxu0 %v478
    %729 = vmatpush1.msra.mxu0 %v477
    %730 = vmatprep.subr.mxu0 %v485
    %731 = vmatpush1.msra.mxu0 %v484
    %732 = vmatprep.subr.mxu0 %v492
    %733 = vmatpush1.msra.mxu0 %v491
    %734 = vmatprep.subr.mxu0 %v499
    %735 = vmatpush1.msra.mxu0 %v498
    %736 = vmatprep.mubr.f32.mxu0 %v278
    %737 = vmatmul.mubr.f32.gmra.mrb[0].mxu0 %v277
    %v738 = vpop.f32.mrb[0].mxu0
    %v739 = vadd.f32 %v636, %v738
    %v740 = vpop.f32.mrb[0].mxu0
    %v741 = vadd.f32 %v640, %v740
    %742 = vdwg.mxu0
    %743 = vmatprep.subr.mxu0 %v506
    %744 = vmatpush1.msra.mxu0 %v505
    %745 = vmatprep.subr.mxu0 %v513
    %746 = vmatpush1.msra.mxu0 %v512
    %747 = vmatprep.subr.mxu0 %v520
    %748 = vmatpush1.msra.mxu0 %v519
    %749 = vmatprep.subr.mxu0 %v527
    %750 = vmatpush1.msra.mxu0 %v526
    %751 = vmatprep.subr.mxu0 %v534
    %752 = vmatpush1.msra.mxu0 %v533
    %753 = vmatprep.subr.mxu0 %v541
    %754 = vmatpush1.msra.mxu0 %v540
    %755 = vmatprep.subr.mxu0 %v548
    %756 = vmatpush1.msra.mxu0 %v547
    %757 = vmatprep.subr.mxu0 %v555
    %758 = vmatpush1.msra.mxu0 %v554
    %759 = vmatprep.subr.mxu0 %v562
    %760 = vmatpush1.msra.mxu0 %v561
    %761 = vmatprep.subr.mxu0 %v569
    %762 = vmatpush1.msra.mxu0 %v568
    %763 = vmatprep.subr.mxu0 %v576
    %764 = vmatpush1.msra.mxu0 %v575
    %765 = vmatprep.subr.mxu0 %v583
    %766 = vmatpush1.msra.mxu0 %v582
    %767 = vmatprep.subr.mxu0 %v590
    %768 = vmatpush1.msra.mxu0 %v589
    %769 = vmatprep.subr.mxu0 %v597
    %770 = vmatpush1.msra.mxu0 %v596
    %771 = vmatprep.subr.mxu0 %v604
    %772 = vmatpush1.msra.mxu0 %v603
    %773 = vmatprep.subr.mxu0 %v611
    %774 = vmatpush1.msra.mxu0 %v610
    %775 = vmatprep.subr.mxu0 %v618
    %776 = vmatpush1.msra.mxu0 %v617
    %777 = vmatprep.subr.mxu0 %v625
    %778 = vmatpush1.msra.mxu0 %v624
    %779 = vmatprep.subr.mxu0 0.0
    %780 = vmatpush1.msra.mxu0 0.0
    %781 = vmatprep.subr.mxu0 0.0
    %782 = vmatpush1.msra.mxu0 0.0
    %783 = vmatprep.subr.mxu0 0.0
    %784 = vmatpush1.msra.mxu0 0.0
    %785 = vmatprep.subr.mxu0 0.0
    %786 = vmatpush1.msra.mxu0 0.0
    %787 = vmatprep.subr.mxu0 0.0
    %788 = vmatpush1.msra.mxu0 0.0
    %789 = vmatprep.subr.mxu0 0.0
    %790 = vmatpush1.msra.mxu0 0.0
    %791 = vmatprep.subr.mxu0 0.0
    %792 = vmatpush1.msra.mxu0 0.0
    %793 = vmatprep.subr.mxu0 0.0
    %794 = vmatpush1.msra.mxu0 0.0
    %795 = vmatprep.subr.mxu0 0.0
    %796 = vmatpush1.msra.mxu0 0.0
    %797 = vmatprep.subr.mxu0 0.0
    %798 = vmatpush1.msra.mxu0 0.0
    %799 = vmatprep.subr.mxu0 0.0
    %800 = vmatpush1.msra.mxu0 0.0
    %801 = vmatprep.subr.mxu0 0.0
    %802 = vmatpush1.msra.mxu0 0.0
    %803 = vmatprep.subr.mxu0 0.0
    %804 = vmatpush1.msra.mxu0 0.0
    %805 = vmatprep.subr.mxu0 0.0
    %806 = vmatpush1.msra.mxu0 0.0
    %807 = vmatprep.mubr.f32.mxu0 %v670
    %808 = vmatmul.mubr.f32.gmra.mrb[0].mxu0 %v279
    %v809 = vpop.f32.mrb[0].mxu0
    %v810 = vadd.f32 %v739, %v809
    %v811 = vpop.f32.mrb[0].mxu0
    %v812 = vadd.f32 %v741, %v811
    %813 = vdwg.mxu0
    %814 = vmatprep.subr.mxu0 %v284
    %815 = vmatpush1.msra.mxu0 %v283
    %816 = vmatprep.subr.mxu0 %v291
    %817 = vmatpush1.msra.mxu0 %v290
    %818 = vmatprep.subr.mxu0 %v298
    %819 = vmatpush1.msra.mxu0 %v297
    %820 = vmatprep.subr.mxu0 %v305
    %821 = vmatpush1.msra.mxu0 %v304
    %822 = vmatprep.subr.mxu0 %v312
    %823 = vmatpush1.msra.mxu0 %v311
    %824 = vmatprep.subr.mxu0 %v319
    %825 = vmatpush1.msra.mxu0 %v318
    %826 = vmatprep.subr.mxu0 %v326
    %827 = vmatpush1.msra.mxu0 %v325
    %828 = vmatprep.subr.mxu0 %v333
    %829 = vmatpush1.msra.mxu0 %v332
    %830 = vmatprep.subr.mxu0 %v340
    %831 = vmatpush1.msra.mxu0 %v339
    %832 = vmatprep.subr.mxu0 %v347
    %833 = vmatpush1.msra.mxu0 %v346
    %834 = vmatprep.subr.mxu0 %v354
    %835 = vmatpush1.msra.mxu0 %v353
    %836 = vmatprep.subr.mxu0 %v361
    %837 = vmatpush1.msra.mxu0 %v360
    %838 = vmatprep.subr.mxu0 %v368
    %839 = vmatpush1.msra.mxu0 %v367
    %840 = vmatprep.subr.mxu0 %v375
    %841 = vmatpush1.msra.mxu0 %v374
    %842 = vmatprep.subr.mxu0 %v382
    %843 = vmatpush1.msra.mxu0 %v381
    %844 = vmatprep.subr.mxu0 %v389
    %845 = vmatpush1.msra.mxu0 %v388
    %846 = vmatprep.subr.mxu0 %v396
    %847 = vmatpush1.msra.mxu0 %v395
    %848 = vmatprep.subr.mxu0 %v403
    %849 = vmatpush1.msra.mxu0 %v402
    %850 = vmatprep.subr.mxu0 %v410
    %851 = vmatpush1.msra.mxu0 %v409
    %852 = vmatprep.subr.mxu0 %v417
    %853 = vmatpush1.msra.mxu0 %v416
    %854 = vmatprep.subr.mxu0 %v424
    %855 = vmatpush1.msra.mxu0 %v423
    %856 = vmatprep.subr.mxu0 %v431
    %857 = vmatpush1.msra.mxu0 %v430
    %858 = vmatprep.subr.mxu0 %v438
    %859 = vmatpush1.msra.mxu0 %v437
    %860 = vmatprep.subr.mxu0 %v445
    %861 = vmatpush1.msra.mxu0 %v444
    %862 = vmatprep.subr.mxu0 %v452
    %863 = vmatpush1.msra.mxu0 %v451
    %864 = vmatprep.subr.mxu0 %v459
    %865 = vmatpush1.msra.mxu0 %v458
    %866 = vmatprep.subr.mxu0 %v466
    %867 = vmatpush1.msra.mxu0 %v465
    %868 = vmatprep.subr.mxu0 %v473
    %869 = vmatpush1.msra.mxu0 %v472
    %870 = vmatprep.subr.mxu0 %v480
    %871 = vmatpush1.msra.mxu0 %v479
    %872 = vmatprep.subr.mxu0 %v487
    %873 = vmatpush1.msra.mxu0 %v486
    %874 = vmatprep.subr.mxu0 %v494
    %875 = vmatpush1.msra.mxu0 %v493
    %876 = vmatprep.subr.mxu0 %v501
    %877 = vmatpush1.msra.mxu0 %v500
    %878 = vmatprep.mubr.f32.mxu0 %v278
    %879 = vmatmul.mubr.f32.gmra.mrb[0].mxu0 %v277
    %v880 = vpop.f32.mrb[0].mxu0
    %v881 = vadd.f32 %v644, %v880
    %v882 = vpop.f32.mrb[0].mxu0
    %v883 = vadd.f32 %v648, %v882
    %884 = vdwg.mxu0
    %885 = vmatprep.subr.mxu0 %v508
    %886 = vmatpush1.msra.mxu0 %v507
    %887 = vmatprep.subr.mxu0 %v515
    %888 = vmatpush1.msra.mxu0 %v514
    %889 = vmatprep.subr.mxu0 %v522
    %890 = vmatpush1.msra.mxu0 %v521
    %891 = vmatprep.subr.mxu0 %v529
    %892 = vmatpush1.msra.mxu0 %v528
    %893 = vmatprep.subr.mxu0 %v536
    %894 = vmatpush1.msra.mxu0 %v535
    %895 = vmatprep.subr.mxu0 %v543
    %896 = vmatpush1.msra.mxu0 %v542
    %897 = vmatprep.subr.mxu0 %v550
    %898 = vmatpush1.msra.mxu0 %v549
    %899 = vmatprep.subr.mxu0 %v557
    %900 = vmatpush1.msra.mxu0 %v556
    %901 = vmatprep.subr.mxu0 %v564
    %902 = vmatpush1.msra.mxu0 %v563
    %903 = vmatprep.subr.mxu0 %v571
    %904 = vmatpush1.msra.mxu0 %v570
    %905 = vmatprep.subr.mxu0 %v578
    %906 = vmatpush1.msra.mxu0 %v577
    %907 = vmatprep.subr.mxu0 %v585
    %908 = vmatpush1.msra.mxu0 %v584
    %909 = vmatprep.subr.mxu0 %v592
    %910 = vmatpush1.msra.mxu0 %v591
    %911 = vmatprep.subr.mxu0 %v599
    %912 = vmatpush1.msra.mxu0 %v598
    %913 = vmatprep.subr.mxu0 %v606
    %914 = vmatpush1.msra.mxu0 %v605
    %915 = vmatprep.subr.mxu0 %v613
    %916 = vmatpush1.msra.mxu0 %v612
    %917 = vmatprep.subr.mxu0 %v620
    %918 = vmatpush1.msra.mxu0 %v619
    %919 = vmatprep.subr.mxu0 %v627
    %920 = vmatpush1.msra.mxu0 %v626
    %921 = vmatprep.subr.mxu0 0.0
    %922 = vmatpush1.msra.mxu0 0.0
    %923 = vmatprep.subr.mxu0 0.0
    %924 = vmatpush1.msra.mxu0 0.0
    %925 = vmatprep.subr.mxu0 0.0
    %926 = vmatpush1.msra.mxu0 0.0
    %927 = vmatprep.subr.mxu0 0.0
    %928 = vmatpush1.msra.mxu0 0.0
    %929 = vmatprep.subr.mxu0 0.0
    %930 = vmatpush1.msra.mxu0 0.0
    %931 = vmatprep.subr.mxu0 0.0
    %932 = vmatpush1.msra.mxu0 0.0
    %933 = vmatprep.subr.mxu0 0.0
    %934 = vmatpush1.msra.mxu0 0.0
    %935 = vmatprep.subr.mxu0 0.0
    %936 = vmatpush1.msra.mxu0 0.0
    %937 = vmatprep.subr.mxu0 0.0
    %938 = vmatpush1.msra.mxu0 0.0
    %939 = vmatprep.subr.mxu0 0.0
    %940 = vmatpush1.msra.mxu0 0.0
    %941 = vmatprep.subr.mxu0 0.0
    %942 = vmatpush1.msra.mxu0 0.0
    %943 = vmatprep.subr.mxu0 0.0
    %944 = vmatpush1.msra.mxu0 0.0
    %945 = vmatprep.subr.mxu0 0.0
    %946 = vmatpush1.msra.mxu0 0.0
    %947 = vmatprep.subr.mxu0 0.0
    %948 = vmatpush1.msra.mxu0 0.0
    %949 = vmatprep.mubr.f32.mxu0 %v670
    %950 = vmatmul.mubr.f32.gmra.mrb[0].mxu0 %v279
    %v951 = vpop.f32.mrb[0].mxu0
    %v952 = vadd.f32 %v881, %v951
    %v953 = vpop.f32.mrb[0].mxu0
    %v954 = vadd.f32 %v883, %v953
    %955 = vdwg.mxu0
    %956 = vmatprep.subr.mxu0 %v286
    %957 = vmatpush1.msra.mxu0 %v285
    %958 = vmatprep.subr.mxu0 %v293
    %959 = vmatpush1.msra.mxu0 %v292
    %960 = vmatprep.subr.mxu0 %v300
    %961 = vmatpush1.msra.mxu0 %v299
    %962 = vmatprep.subr.mxu0 %v307
    %963 = vmatpush1.msra.mxu0 %v306
    %964 = vmatprep.subr.mxu0 %v314
    %965 = vmatpush1.msra.mxu0 %v313
    %966 = vmatprep.subr.mxu0 %v321
    %967 = vmatpush1.msra.mxu0 %v320
    %968 = vmatprep.subr.mxu0 %v328
    %969 = vmatpush1.msra.mxu0 %v327
    %970 = vmatprep.subr.mxu0 %v335
    %971 = vmatpush1.msra.mxu0 %v334
    %972 = vmatprep.subr.mxu0 %v342
    %973 = vmatpush1.msra.mxu0 %v341
    %974 = vmatprep.subr.mxu0 %v349
    %975 = vmatpush1.msra.mxu0 %v348
    %976 = vmatprep.subr.mxu0 %v356
    %977 = vmatpush1.msra.mxu0 %v355
    %978 = vmatprep.subr.mxu0 %v363
    %979 = vmatpush1.msra.mxu0 %v362
    %980 = vmatprep.subr.mxu0 %v370
    %981 = vmatpush1.msra.mxu0 %v369
    %982 = vmatprep.subr.mxu0 %v377
    %983 = vmatpush1.msra.mxu0 %v376
    %984 = vmatprep.subr.mxu0 %v384
    %985 = vmatpush1.msra.mxu0 %v383
    %986 = vmatprep.subr.mxu0 %v391
    %987 = vmatpush1.msra.mxu0 %v390
    %988 = vmatprep.subr.mxu0 %v398
    %989 = vmatpush1.msra.mxu0 %v397
    %990 = vmatprep.subr.mxu0 %v405
    %991 = vmatpush1.msra.mxu0 %v404
    %992 = vmatprep.subr.mxu0 %v412
    %993 = vmatpush1.msra.mxu0 %v411
    %994 = vmatprep.subr.mxu0 %v419
    %995 = vmatpush1.msra.mxu0 %v418
    %996 = vmatprep.subr.mxu0 %v426
    %997 = vmatpush1.msra.mxu0 %v425
    %998 = vmatprep.subr.mxu0 %v433
    %999 = vmatpush1.msra.mxu0 %v432
    %1000 = vmatprep.subr.mxu0 %v440
    %1001 = vmatpush1.msra.mxu0 %v439
    %1002 = vmatprep.subr.mxu0 %v447
    %1003 = vmatpush1.msra.mxu0 %v446
    %1004 = vmatprep.subr.mxu0 %v454
    %1005 = vmatpush1.msra.mxu0 %v453
    %1006 = vmatprep.subr.mxu0 %v461
    %1007 = vmatpush1.msra.mxu0 %v460
    %1008 = vmatprep.subr.mxu0 %v468
    %1009 = vmatpush1.msra.mxu0 %v467
    %1010 = vmatprep.subr.mxu0 %v475
    %1011 = vmatpush1.msra.mxu0 %v474
    %1012 = vmatprep.subr.mxu0 %v482
    %1013 = vmatpush1.msra.mxu0 %v481
    %1014 = vmatprep.subr.mxu0 %v489
    %1015 = vmatpush1.msra.mxu0 %v488
    %1016 = vmatprep.subr.mxu0 %v496
    %1017 = vmatpush1.msra.mxu0 %v495
    %1018 = vmatprep.subr.mxu0 %v503
    %1019 = vmatpush1.msra.mxu0 %v502
    %1020 = vmatprep.mubr.f32.mxu0 %v278
    %1021 = vmatmul.mubr.f32.gmra.mrb[0].mxu0 %v277
    %v1022 = vpop.f32.mrb[0].mxu0
    %v1023 = vadd.f32 %v652, %v1022
    %v1024 = vpop.f32.mrb[0].mxu0
    %v1025 = vadd.f32 %v656, %v1024
    %1026 = vdwg.mxu0
    %1027 = vmatprep.subr.mxu0 %v510
    %1028 = vmatpush1.msra.mxu0 %v509
    %1029 = vmatprep.subr.mxu0 %v517
    %1030 = vmatpush1.msra.mxu0 %v516
    %1031 = vmatprep.subr.mxu0 %v524
    %1032 = vmatpush1.msra.mxu0 %v523
    %1033 = vmatprep.subr.mxu0 %v531
    %1034 = vmatpush1.msra.mxu0 %v530
    %1035 = vmatprep.subr.mxu0 %v538
    %1036 = vmatpush1.msra.mxu0 %v537
    %1037 = vmatprep.subr.mxu0 %v545
    %1038 = vmatpush1.msra.mxu0 %v544
    %1039 = vmatprep.subr.mxu0 %v552
    %1040 = vmatpush1.msra.mxu0 %v551
    %1041 = vmatprep.subr.mxu0 %v559
    %1042 = vmatpush1.msra.mxu0 %v558
    %1043 = vmatprep.subr.mxu0 %v566
    %1044 = vmatpush1.msra.mxu0 %v565
    %1045 = vmatprep.subr.mxu0 %v573
    %1046 = vmatpush1.msra.mxu0 %v572
    %1047 = vmatprep.subr.mxu0 %v580
    %1048 = vmatpush1.msra.mxu0 %v579
    %1049 = vmatprep.subr.mxu0 %v587
    %1050 = vmatpush1.msra.mxu0 %v586
    %1051 = vmatprep.subr.mxu0 %v594
    %1052 = vmatpush1.msra.mxu0 %v593
    %1053 = vmatprep.subr.mxu0 %v601
    %1054 = vmatpush1.msra.mxu0 %v600
    %1055 = vmatprep.subr.mxu0 %v608
    %1056 = vmatpush1.msra.mxu0 %v607
    %1057 = vmatprep.subr.mxu0 %v615
    %1058 = vmatpush1.msra.mxu0 %v614
    %1059 = vmatprep.subr.mxu0 %v622
    %1060 = vmatpush1.msra.mxu0 %v621
    %1061 = vmatprep.subr.mxu0 %v629
    %1062 = vmatpush1.msra.mxu0 %v628
    %1063 = vmatprep.subr.mxu0 0.0
    %1064 = vmatpush1.msra.mxu0 0.0
    %1065 = vmatprep.subr.mxu0 0.0
    %1066 = vmatpush1.msra.mxu0 0.0
    %1067 = vmatprep.subr.mxu0 0.0
    %1068 = vmatpush1.msra.mxu0 0.0
    %1069 = vmatprep.subr.mxu0 0.0
    %1070 = vmatpush1.msra.mxu0 0.0
    %1071 = vmatprep.subr.mxu0 0.0
    %1072 = vmatpush1.msra.mxu0 0.0
    %1073 = vmatprep.subr.mxu0 0.0
    %1074 = vmatpush1.msra.mxu0 0.0
    %1075 = vmatprep.subr.mxu0 0.0
    %1076 = vmatpush1.msra.mxu0 0.0
    %1077 = vmatprep.subr.mxu0 0.0
    %1078 = vmatpush1.msra.mxu0 0.0
    %1079 = vmatprep.subr.mxu0 0.0
    %1080 = vmatpush1.msra.mxu0 0.0
    %1081 = vmatprep.subr.mxu0 0.0
    %1082 = vmatpush1.msra.mxu0 0.0
    %1083 = vmatprep.subr.mxu0 0.0
    %1084 = vmatpush1.msra.mxu0 0.0
    %1085 = vmatprep.subr.mxu0 0.0
    %1086 = vmatpush1.msra.mxu0 0.0
    %1087 = vmatprep.subr.mxu0 0.0
    %1088 = vmatpush1.msra.mxu0 0.0
    %1089 = vmatprep.subr.mxu0 0.0
    %1090 = vmatpush1.msra.mxu0 0.0
    %1091 = vmatprep.mubr.f32.mxu0 %v670
    %1092 = vmatmul.mubr.f32.gmra.mrb[0].mxu0 %v279
    %v1093 = vpop.f32.mrb[0].mxu0
    %v1094 = vadd.f32 %v1023, %v1093
    %v1095 = vpop.f32.mrb[0].mxu0
    %v1096 = vadd.f32 %v1025, %v1095
    %1097 = vdwg.mxu0
    %1098 = vmatprep.subr.mxu0 0.0
    %1099 = vmatpush1.msra.mxu0 %v287
    %1100 = vmatprep.subr.mxu0 0.0
    %1101 = vmatpush1.msra.mxu0 %v294
    %1102 = vmatprep.subr.mxu0 0.0
    %1103 = vmatpush1.msra.mxu0 %v301
    %1104 = vmatprep.subr.mxu0 0.0
    %1105 = vmatpush1.msra.mxu0 %v308
    %1106 = vmatprep.subr.mxu0 0.0
    %1107 = vmatpush1.msra.mxu0 %v315
    %1108 = vmatprep.subr.mxu0 0.0
    %1109 = vmatpush1.msra.mxu0 %v322
    %1110 = vmatprep.subr.mxu0 0.0
    %1111 = vmatpush1.msra.mxu0 %v329
    %1112 = vmatprep.subr.mxu0 0.0
    %1113 = vmatpush1.msra.mxu0 %v336
    %1114 = vmatprep.subr.mxu0 0.0
    %1115 = vmatpush1.msra.mxu0 %v343
    %1116 = vmatprep.subr.mxu0 0.0
    %1117 = vmatpush1.msra.mxu0 %v350
    %1118 = vmatprep.subr.mxu0 0.0
    %1119 = vmatpush1.msra.mxu0 %v357
    %1120 = vmatprep.subr.mxu0 0.0
    %1121 = vmatpush1.msra.mxu0 %v364
    %1122 = vmatprep.subr.mxu0 0.0
    %1123 = vmatpush1.msra.mxu0 %v371
    %1124 = vmatprep.subr.mxu0 0.0
    %1125 = vmatpush1.msra.mxu0 %v378
    %1126 = vmatprep.subr.mxu0 0.0
    %1127 = vmatpush1.msra.mxu0 %v385
    %1128 = vmatprep.subr.mxu0 0.0
    %1129 = vmatpush1.msra.mxu0 %v392
    %1130 = vmatprep.subr.mxu0 0.0
    %1131 = vmatpush1.msra.mxu0 %v399
    %1132 = vmatprep.subr.mxu0 0.0
    %1133 = vmatpush1.msra.mxu0 %v406
    %1134 = vmatprep.subr.mxu0 0.0
    %1135 = vmatpush1.msra.mxu0 %v413
    %1136 = vmatprep.subr.mxu0 0.0
    %1137 = vmatpush1.msra.mxu0 %v420
    %1138 = vmatprep.subr.mxu0 0.0
    %1139 = vmatpush1.msra.mxu0 %v427
    %1140 = vmatprep.subr.mxu0 0.0
    %1141 = vmatpush1.msra.mxu0 %v434
    %1142 = vmatprep.subr.mxu0 0.0
    %1143 = vmatpush1.msra.mxu0 %v441
    %1144 = vmatprep.subr.mxu0 0.0
    %1145 = vmatpush1.msra.mxu0 %v448
    %1146 = vmatprep.subr.mxu0 0.0
    %1147 = vmatpush1.msra.mxu0 %v455
    %1148 = vmatprep.subr.mxu0 0.0
    %1149 = vmatpush1.msra.mxu0 %v462
    %1150 = vmatprep.subr.mxu0 0.0
    %1151 = vmatpush1.msra.mxu0 %v469
    %1152 = vmatprep.subr.mxu0 0.0
    %1153 = vmatpush1.msra.mxu0 %v476
    %1154 = vmatprep.subr.mxu0 0.0
    %1155 = vmatpush1.msra.mxu0 %v483
    %1156 = vmatprep.subr.mxu0 0.0
    %1157 = vmatpush1.msra.mxu0 %v490
    %1158 = vmatprep.subr.mxu0 0.0
    %1159 = vmatpush1.msra.mxu0 %v497
    %1160 = vmatprep.subr.mxu0 0.0
    %1161 = vmatpush1.msra.mxu0 %v504
    %1162 = vmatprep.mubr.f32.mxu0 %v278
    %1163 = vmatmul.mubr.f32.gmra.mrb[0].mxu0 %v277
    %v1164 = vpop.f32.mrb[0].mxu0
    %v1165 = vadd.f32 %v660, %v1164
    %v1166 = vpop.f32.mrb[0].mxu0
    %1167 = vdwg.mxu0
    %1168 = vmatprep.subr.mxu0 0.0
    %1169 = vmatpush1.msra.mxu0 %v511
    %1170 = vmatprep.subr.mxu0 0.0
    %1171 = vmatpush1.msra.mxu0 %v518
    %1172 = vmatprep.subr.mxu0 0.0
    %1173 = vmatpush1.msra.mxu0 %v525
    %1174 = vmatprep.subr.mxu0 0.0
    %1175 = vmatpush1.msra.mxu0 %v532
    %1176 = vmatprep.subr.mxu0 0.0
    %1177 = vmatpush1.msra.mxu0 %v539
    %1178 = vmatprep.subr.mxu0 0.0
    %1179 = vmatpush1.msra.mxu0 %v546
    %1180 = vmatprep.subr.mxu0 0.0
    %1181 = vmatpush1.msra.mxu0 %v553
    %1182 = vmatprep.subr.mxu0 0.0
    %1183 = vmatpush1.msra.mxu0 %v560
    %1184 = vmatprep.subr.mxu0 0.0
    %1185 = vmatpush1.msra.mxu0 %v567
    %1186 = vmatprep.subr.mxu0 0.0
    %1187 = vmatpush1.msra.mxu0 %v574
    %1188 = vmatprep.subr.mxu0 0.0
    %1189 = vmatpush1.msra.mxu0 %v581
    %1190 = vmatprep.subr.mxu0 0.0
    %1191 = vmatpush1.msra.mxu0 %v588
    %1192 = vmatprep.subr.mxu0 0.0
    %1193 = vmatpush1.msra.mxu0 %v595
    %1194 = vmatprep.subr.mxu0 0.0
    %1195 = vmatpush1.msra.mxu0 %v602
    %1196 = vmatprep.subr.mxu0 0.0
    %1197 = vmatpush1.msra.mxu0 %v609
    %1198 = vmatprep.subr.mxu0 0.0
    %1199 = vmatpush1.msra.mxu0 %v616
    %1200 = vmatprep.subr.mxu0 0.0
    %1201 = vmatpush1.msra.mxu0 %v623
    %1202 = vmatprep.subr.mxu0 0.0
    %1203 = vmatpush1.msra.mxu0 %v630
    %1204 = vmatprep.subr.mxu0 0.0
    %1205 = vmatpush1.msra.mxu0 0.0
    %1206 = vmatprep.subr.mxu0 0.0
    %1207 = vmatpush1.msra.mxu0 0.0
    %1208 = vmatprep.subr.mxu0 0.0
    %1209 = vmatpush1.msra.mxu0 0.0
    %1210 = vmatprep.subr.mxu0 0.0
    %1211 = vmatpush1.msra.mxu0 0.0
    %1212 = vmatprep.subr.mxu0 0.0
    %1213 = vmatpush1.msra.mxu0 0.0
    %1214 = vmatprep.subr.mxu0 0.0
    %1215 = vmatpush1.msra.mxu0 0.0
    %1216 = vmatprep.subr.mxu0 0.0
    %1217 = vmatpush1.msra.mxu0 0.0
    %1218 = vmatprep.subr.mxu0 0.0
    %1219 = vmatpush1.msra.mxu0 0.0
    %1220 = vmatprep.subr.mxu0 0.0
    %1221 = vmatpush1.msra.mxu0 0.0
    %1222 = vmatprep.subr.mxu0 0.0
    %1223 = vmatpush1.msra.mxu0 0.0
    %1224 = vmatprep.subr.mxu0 0.0
    %1225 = vmatpush1.msra.mxu0 0.0
    %1226 = vmatprep.subr.mxu0 0.0
    %1227 = vmatpush1.msra.mxu0 0.0
    %1228 = vmatprep.subr.mxu0 0.0
    %1229 = vmatpush1.msra.mxu0 0.0
    %1230 = vmatprep.subr.mxu0 0.0
    %1231 = vmatpush1.msra.mxu0 0.0
    %1232 = vmatprep.mubr.f32.mxu0 %v670
    %1233 = vmatmul.mubr.f32.gmra.mrb[0].mxu0 %v279
    %v1234 = vpop.f32.mrb[0].mxu0
    %v1235 = vadd.f32 %v1165, %v1234
    %v1236 = vpop.f32.mrb[0].mxu0
    %1237 = vdwg.mxu0
    %v1238 = vxor.u32 %v810, 2147483648
    %v1239 = vxor.u32 %v812, 2147483648
    %v1240 = vxor.u32 %v952, 2147483648
    %v1241 = vxor.u32 %v954, 2147483648
    %v1242 = vxor.u32 %v1094, 2147483648
    %v1243 = vxor.u32 %v1096, 2147483648
    %v1244 = vxor.u32 %v1235, 2147483648
    %v1245 = vmul.f32 %v1238, 1.442695
    %v1246 = vpow.pop %v1245
    %v1247 = vmul.f32 %v1239, 1.442695
    %v1248 = vpow.pop %v1247
    %v1249 = vmul.f32 %v1240, 1.442695
    %v1250 = vpow.pop %v1249
    %v1251 = vmul.f32 %v1241, 1.442695
    %v1252 = vpow.pop %v1251
    %v1253 = vmul.f32 %v1242, 1.442695
    %v1254 = vpow.pop %v1253
    %v1255 = vmul.f32 %v1243, 1.442695
    %v1256 = vpow.pop %v1255
    %v1257 = vmul.f32 %v1244, 1.442695
    %v1258 = vpow.pop %v1257
    %v1259 = vadd.f32 %v1246, 1.0
    %v1260 = vadd.f32 %v1248, 1.0
    %v1261 = vadd.f32 %v1250, 1.0
    %v1262 = vadd.f32 %v1252, 1.0
    %v1263 = vadd.f32 %v1254, 1.0
    %v1264 = vadd.f32 %v1256, 1.0
    %v1265 = vadd.f32 %v1258, 1.0
    %v1266 = vrcp.pop %v1259
    %v1267 = vmul.f32 1.0, %v1266
    %v1268 = vrcp.pop %v1260
    %v1269 = vmul.f32 1.0, %v1268
    %v1270 = vrcp.pop %v1261
    %v1271 = vmul.f32 1.0, %v1270
    %v1272 = vrcp.pop %v1262
    %v1273 = vmul.f32 1.0, %v1272
    %v1274 = vrcp.pop %v1263
    %v1275 = vmul.f32 1.0, %v1274
    %v1276 = vrcp.pop %v1264
    %v1277 = vmul.f32 1.0, %v1276
    %v1278 = vrcp.pop %v1265
    %v1279 = vmul.f32 1.0, %v1278
    %v1280 = vmax.f32 %v1267, 1e-06
    %v1281 = vmax.f32 %v1269, 1e-06
    %v1282 = vmax.f32 %v1271, 1e-06
    %v1283 = vmax.f32 %v1273, 1e-06
    %v1284 = vmax.f32 %v1275, 1e-06
    %v1285 = vmax.f32 %v1277, 1e-06
    %v1286 = vmax.f32 %v1279, 1e-06
    %v1287 = vmin.f32 %v1280, 0.999999
    %v1288 = vmin.f32 %v1281, 0.999999
    %v1289 = vmin.f32 %v1282, 0.999999
    %v1290 = vmin.f32 %v1283, 0.999999
    %v1291 = vmin.f32 %v1284, 0.999999
    %v1292 = vmin.f32 %v1285, 0.999999
    %v1293 = vmin.f32 %v1286, 0.999999
    %1294 = vst [vmem:[#allocation11] sm:$0xff] %v1287
    %1295 = vst [vmem:[#allocation11 + $0x8] sm:$0xff] %v1288
    %1296 = vst [vmem:[#allocation11 + $0x10] sm:$0xff] %v1289
    %1297 = vst [vmem:[#allocation11 + $0x18] sm:$0xff] %v1290
    %1298 = vst [vmem:[#allocation11 + $0x20] sm:$0xff] %v1291
    %1299 = vst [vmem:[#allocation11 + $0x28] sm:$0xff] %v1292
    %1300 = vst [vmem:[#allocation11 + $0x30] sm:$0xff] %v1293
    // Predicated region
    $region42: #{tpu_custom_call.1} parent=1 // pred_check
      _
    $region43: #{tpu_custom_call.1} parent=1 // pred_check_branch
      %1302 = sbr.rel (0) target = $region45
    $region44: #{tpu_custom_call.1} parent=1 // pred_region
      %s1304 = ssub.s32 896, 896
      %1305 = vsyncadd [#allocation4], %s1304
      %s1307 = sshll.u32 [#allocation11], 4
      %s1308 = int_to_ptr.vmem [resolvable:$true] %s1307
      %1310 = dma.vmem_to_hbm [thread:$0]  %s1308, 896, %s5, [#allocation4]
    $region45: #{tpu_custom_call.1} parent=1 // pred_fallthru
      _
    // Predicated region
    $region46: #{tpu_custom_call.1} parent=1 // pred_check
      _
    $region47: #{tpu_custom_call.1} parent=1 // pred_check_branch
      %1312 = sbr.rel (0) target = $region49
    $region48: #{tpu_custom_call.1} parent=1 // pred_region
      %1313 = dma.done [#allocation4], 896
    $region49: #{tpu_custom_call.1} parent=1 // pred_fallthru
      _
    %1314 = vsyncpa [#allocation3], 1
    %1315 = vsyncpa [#allocation6], 1
    %1316 = vsyncpa [#allocation9], 1
    %1317 = vsyncpa [#allocation4], 1

</llo_original>
